<compile_context>
chip_gen: v5e
topology: v5e:2x2
jax: 0.10.0
libtpu: 0.0.40
codegen_flags: <defaults>
</compile_context>

<pallas_src>
import functools

import jax
import jax.numpy as jnp
from jax.experimental import pallas as pl
from jax.experimental.pallas import tpu as pltpu


# ---------------------------------------------------------------------------
# In-kernel helpers (operate on VMEM-resident values)
# ---------------------------------------------------------------------------
def _relu_bf16(x):
    # Downcast-then-ReLU: ReLU commutes with the bf16 round (monotone, exact at 0);
    # bf16 VPU ops are packed 2-per-lane on v6e/v7x (harmless on v5e).
    return jnp.maximum(x.astype(jnp.bfloat16), 0)


def _conv3_same(x, w, b, dil):
    """Stride-1 'same' Conv1d, k=3, dilation=dil, as one MXU matmul.

    x: (L, C_in) f32 or bf16; w: (3*C_in, C_out) bf16 im2col layout;
    b: (1, C_out) f32.  Returns (L, C_out) f32.
    """
    L, C = x.shape
    z = jnp.zeros((dil, C), x.dtype)
    xp = jnp.concatenate([z, x, z], axis=0)                    # in-VMEM "same" pad
    cols = jnp.concatenate(
        [xp[0:L], xp[dil:dil + L], xp[2 * dil:2 * dil + L]], axis=-1)
    return jnp.dot(cols.astype(jnp.bfloat16), w,
                   preferred_element_type=jnp.float32) + b


# ---------------------------------------------------------------------------
# Fused stage kernel:
#   [conv_in(k=3,p=1) + ReLU]? -> Conv1d(k=2s, stride=s, p=s//2)
#   -> n_depth x ResConv1DBlock -> [conv_out(k=3,p=1)]?
# ---------------------------------------------------------------------------
def _stage_kernel(*refs, stride, pad, dilations, has_conv_in, has_conv_out):
    o_ref = refs[-1]
    it = iter(refs[:-1])
    x = next(it)[0]                                   # (L, C_in)

    if has_conv_in:
        w_in, b_in = next(it)[...], next(it)[...]
        x = _relu_bf16(_conv3_same(x, w_in, b_in, 1))  # (L, mid) bf16
    else:
        x = x.astype(jnp.bfloat16)                     # already bf16 from prev stage

    L, C = x.shape
    L_out = o_ref.shape[1]

    # --- strided downsample conv (k = 2*stride, 'same' pad = stride//2) ----------
    w_d, b_d = next(it)[...], next(it)[...]
    if pad > 0:
        zp = jnp.zeros((pad, C), x.dtype)
        xp = jnp.concatenate([zp, x, zp], axis=0)
    else:
        xp = x
    Lp = L + 2 * pad
    extra = (-Lp) % stride                             # only if L % stride != 0
    if extra:
        xp = jnp.concatenate([xp, jnp.zeros((extra, C), x.dtype)], axis=0)
        Lp += extra
    n_frames = Lp // stride

    if stride == 1 or C % 128 == 0:
        # Frame formulation: with k = 2*stride taps, output t consumes exactly
        # frames t and t+1 of the padded input viewed as (n_frames, stride*C).
        # One lane-aligned relayout + two contiguous slices (no per-phase gathers).
        xf = xp.reshape(n_frames, stride * C)
        cols = jnp.concatenate([xf[0:L_out], xf[1:1 + L_out]], axis=-1)
    else:
        # Narrow (sub-128-lane) channels: minor-dim folding is not lane-aligned,
        # use the proven polyphase per-phase slices instead.
        xr = xp.reshape(n_frames, stride, C)
        taps = []
        for k in range(2 * stride):
            base, phase = divmod(k, stride)            # tap offset k = base*stride+phase
            taps.append(xr[base:base + L_out, phase, :])
        cols = jnp.concatenate(taps, axis=-1)          # (L_out, 2*stride*C)

    h = jnp.dot(cols, w_d, preferred_element_type=jnp.float32) + b_d   # f32

    # --- Resnet1D: n_depth ResConv1DBlocks, fully VMEM-resident -----------------
    for dil in dilations:
        w1, b1 = next(it)[...], next(it)[...]
        w2, b2 = next(it)[...], next(it)[...]
        r = h                                          # residual (f32)
        a = _relu_bf16(h)
        h1 = _conv3_same(a, w1, b1, dil)               # k=3, dilation=dil
        a1 = _relu_bf16(h1)
        h = jnp.dot(a1, w2, preferred_element_type=jnp.float32) + b2 + r   # k=1 conv
        # TODO(synk): nn.Dropout is identity at inference; train-mode dropout not implemented.

    if has_conv_out:
        w_o, b_o = next(it)[...], next(it)[...]
        h = _conv3_same(h, w_o, b_o, 1)                # no activation before conv_out

    o_ref[0] = h.astype(o_ref.dtype)


def _stage_vmem_bytes(in_block_bytes, weight_bytes, L_mid, L_out, mid, c_out):
    """Generous live-VMEM estimate for one fused stage (per grid step)."""
    io = 2 * in_block_bytes + 2 * L_out * c_out * 4          # double-buffered blocks
    live = 4 * (L_mid + 16) * mid * 2                        # x / padded / frames / cols (bf16)
    live += 16 * L_out * mid * 4                             # res-block f32/bf16 temporaries
    live += 4 * L_out * max(mid, c_out) * 4                  # conv_out im2col + result
    est = weight_bytes + io + live + (4 << 20)               # headroom
    # TODO(synk): beyond ~60 MiB an L-tiled grid with a receptive-field halo is
    # required (v7x physical VMEM is 64 MiB); raising the limit alone won't help.
    return int(min(max(est, 16 << 20), 60 << 20))


def down_stage(x, blk, *, stride_t, conv_in=None, conv_out=None):
    """One pallas_call per downsample stage; optionally fuses the encoder's input
    conv (+ReLU) and/or output conv so their (B, T, mid) intermediates never
    touch HBM."""
    B, L, C_in = x.shape
    filter_t, pad_t = stride_t * 2, stride_t // 2
    mid = blk['down_b'].shape[1]
    L_out = (L + 2 * pad_t - filter_t) // stride_t + 1
    dilations = tuple(rb['dilation'] for rb in blk['res'])
    if conv_out is not None:
        C_out, out_dtype = conv_out[1].shape[1], jnp.float32
    else:
        C_out, out_dtype = mid, jnp.bfloat16

    args = [x]
    in_specs = [pl.BlockSpec((1, L, C_in), lambda i: (i, 0, 0))]

    def add_param(arr):            # weights/biases: constant index map -> fetched once
        args.append(arr)
        in_specs.append(pl.BlockSpec(arr.shape, lambda i: (0, 0)))

    if conv_in is not None:
        add_param(conv_in[0]); add_param(conv_in[1])
    add_param(blk['down_w']); add_param(blk['down_b'])
    for rb in blk['res']:
        for name in ('w1', 'b1', 'w2', 'b2'):
            add_param(rb[name])
    if conv_out is not None:
        add_param(conv_out[0]); add_param(conv_out[1])

    weight_bytes = sum(int(a.size) * a.dtype.itemsize for a in args[1:])
    vmem = _stage_vmem_bytes(L * C_in * x.dtype.itemsize, weight_bytes,
                             L, L_out, mid, C_out)

    kernel = functools.partial(
        _stage_kernel, stride=stride_t, pad=pad_t, dilations=dilations,
        has_conv_in=conv_in is not None, has_conv_out=conv_out is not None)

    return pl.pallas_call(
        kernel,
        out_shape=jax.ShapeDtypeStruct((B, L_out, C_out), out_dtype),
        grid=(B,),
        in_specs=in_specs,
        out_specs=pl.BlockSpec((1, L_out, C_out), lambda i: (i, 0, 0)),
        compiler_params=pltpu.CompilerParams(
            dimension_semantics=("parallel",),         # batch across TensorCores
            vmem_limit_bytes=vmem),
    )(*args)


# ---------------------------------------------------------------------------
# Parameter construction (deterministic synthetic weights, im2col layout)
# ---------------------------------------------------------------------------
def _conv_params(key, c_in, c_out, k):
    """Conv1d weights in pre-transposed im2col layout:
    torch (C_out, C_in, K) -> permute(2, 1, 0) -> reshape(K*C_in, C_out), bf16."""
    kw, kb = jax.random.split(key)
    w = jax.random.normal(kw, (k, c_in, c_out), jnp.float32) * 0.05
    b = jax.random.normal(kb, (c_out,), jnp.float32) * 0.01
    return w.reshape(k * c_in, c_out).astype(jnp.bfloat16), b.reshape(1, c_out)


def make_res_encoder_params(key, *, in_width, mid_width, out_width,
                            down_t, stride_t, n_depth, dilation_growth_rate):
    n_keys = 2 + down_t * (1 + 2 * n_depth)
    keys = iter(jax.random.split(key, n_keys))
    params = {}
    params['conv_in'] = _conv_params(next(keys), in_width, mid_width, 3)
    filter_t = stride_t * 2
    # Resnet1D with reverse_dilation=True: dilations [g^(D-1), ..., g^0]
    dilations = [dilation_growth_rate ** d for d in range(n_depth)][::-1]
    params['down'] = []
    for _ in range(down_t):
        dw, db = _conv_params(next(keys), mid_width, mid_width, filter_t)
        blk = {'down_w': dw, 'down_b': db, 'res': []}
        for dil in dilations:
            w1, b1 = _conv_params(next(keys), mid_width, mid_width, 3)
            w2, b2 = _conv_params(next(keys), mid_width, mid_width, 1)
            blk['res'].append({'dilation': dil, 'w1': w1, 'b1': b1,
                               'w2': w2, 'b2': b2})
        params['down'].append(blk)
    params['conv_out'] = _conv_params(next(keys), mid_width, out_width, 3)
    return params


# ---------------------------------------------------------------------------
# ResEncoder forward (norm=None, activation='relu', double_z=False, eval mode)
# ---------------------------------------------------------------------------
def res_encoder_forward(x, params, *, stride_t):
    """x: (B, T, in_width) f32 (the layout torch's forward receives before its
    permute) -> (B, T_out, out_width) f32, channels-last."""
    down = params['down']
    assert len(down) >= 1, "down_t >= 1 required (matches ResEncoder defaults)"
    h = x
    last = len(down) - 1
    for si, blk in enumerate(down):
        h = down_stage(h, blk, stride_t=stride_t,
                       conv_in=params['conv_in'] if si == 0 else None,
                       conv_out=params['conv_out'] if si == last else None)
    return h


# ---------------------------------------------------------------------------
# Pure-JAX f32 reference (same bf16 weights) for a numerical cross-check
# ---------------------------------------------------------------------------
def _ref_conv(x, w_im2col, b, k, *, stride=1, dilation=1, padding=0):
    c_out = w_im2col.shape[1]
    c_in = w_im2col.shape[0] // k
    w = w_im2col.astype(jnp.float32).reshape(k, c_in, c_out)
    xp = jnp.pad(x, ((0, 0), (padding, padding), (0, 0)))
    L_out = (x.shape[1] + 2 * padding - dilation * (k - 1) - 1) // stride + 1
    acc = jnp.zeros((x.shape[0], L_out, c_out), jnp.float32) + b
    for kk in range(k):
        s = kk * dilation
        xs = xp[:, s:s + stride * (L_out - 1) + 1:stride, :]
        acc = acc + jnp.einsum('blc,co->blo', xs, w[kk])
    return acc


def _ref_forward(x, params, *, stride_t):
    w, b = params['conv_in']
    h = jax.nn.relu(_ref_conv(x, w, b, 3, padding=1))
    for blk in params['down']:
        h = _ref_conv(h, blk['down_w'], blk['down_b'], stride_t * 2,
                      stride=stride_t, padding=stride_t // 2)
        for rb in blk['res']:
            d = rb['dilation']
            h1 = _ref_conv(jax.nn.relu(h), rb['w1'], rb['b1'], 3,
                           dilation=d, padding=d)
            h = _ref_conv(jax.nn.relu(h1), rb['w2'], rb['b2'], 1) + h
    w, b = params['conv_out']
    return _ref_conv(h, w, b, 3, padding=1)


# ---------------------------------------------------------------------------
if __name__ == "__main__":
    # Small but structurally faithful configuration.
    in_width, mid_width, out_width = 8, 32, 32
    down_t, stride_t = 2, 2
    n_depth, dilation_growth_rate = 3, 3
    B, T = 2, 16

    key = jax.random.PRNGKey(0)
    k_params, k_x = jax.random.split(key)

    params = make_res_encoder_params(
        k_params, in_width=in_width, mid_width=mid_width, out_width=out_width,
        down_t=down_t, stride_t=stride_t, n_depth=n_depth,
        dilation_growth_rate=dilation_growth_rate)

    x = jax.random.normal(k_x, (B, T, in_width), jnp.float32)

    out = jax.block_until_ready(res_encoder_forward(x, params, stride_t=stride_t))

    expected_T = T // (stride_t ** down_t)
    assert out.shape == (B, expected_T, out_width), out.shape
    assert bool(jnp.all(jnp.isfinite(out)))

    # Cross-check against the pure-JAX f32 reference (bf16 matmuls -> loose tol).
    ref = _ref_forward(x, params, stride_t=stride_t)
    max_err = float(jnp.max(jnp.abs(out - ref)))
    assert max_err < 5e-2, max_err

    print("KERNEL_OK")
</pallas_src>

<mosaic_0001>
module attributes {stable_mosaic.version = 11 : i64} {
  func.func @_stage_kernel(%arg0: i32, %arg1: memref<1x16x8xf32, #tpu.memory_space<vmem>>, %arg2: memref<24x32xbf16, #tpu.memory_space<vmem>>, %arg3: memref<1x32xf32, #tpu.memory_space<vmem>>, %arg4: memref<128x32xbf16, #tpu.memory_space<vmem>>, %arg5: memref<1x32xf32, #tpu.memory_space<vmem>>, %arg6: memref<96x32xbf16, #tpu.memory_space<vmem>>, %arg7: memref<1x32xf32, #tpu.memory_space<vmem>>, %arg8: memref<32x32xbf16, #tpu.memory_space<vmem>>, %arg9: memref<1x32xf32, #tpu.memory_space<vmem>>, %arg10: memref<96x32xbf16, #tpu.memory_space<vmem>>, %arg11: memref<1x32xf32, #tpu.memory_space<vmem>>, %arg12: memref<32x32xbf16, #tpu.memory_space<vmem>>, %arg13: memref<1x32xf32, #tpu.memory_space<vmem>>, %arg14: memref<96x32xbf16, #tpu.memory_space<vmem>>, %arg15: memref<1x32xf32, #tpu.memory_space<vmem>>, %arg16: memref<32x32xbf16, #tpu.memory_space<vmem>>, %arg17: memref<1x32xf32, #tpu.memory_space<vmem>>, %arg18: memref<1x8x32xbf16, #tpu.memory_space<vmem>>) attributes {dimension_semantics = [#tpu.dimension_semantics<parallel>], iteration_bounds = array<i64: 2>, scalar_prefetch = 0 : i64, scratch_operands = 0 : i64, tpu.core_type = #tpu.core_type<tc>, window_params = [{transform_indices = @transform_0, window_bounds = array<i64: 1, 16, 8>}, {pipeline_mode = #tpu.pipeline_mode<synchronous>, transform_indices = @transform_1, window_bounds = array<i64: 24, 32>}, {pipeline_mode = #tpu.pipeline_mode<synchronous>, transform_indices = @transform_2, window_bounds = array<i64: 1, 32>}, {pipeline_mode = #tpu.pipeline_mode<synchronous>, transform_indices = @transform_3, window_bounds = array<i64: 128, 32>}, {pipeline_mode = #tpu.pipeline_mode<synchronous>, transform_indices = @transform_4, window_bounds = array<i64: 1, 32>}, {pipeline_mode = #tpu.pipeline_mode<synchronous>, transform_indices = @transform_5, window_bounds = array<i64: 96, 32>}, {pipeline_mode = #tpu.pipeline_mode<synchronous>, transform_indices = @transform_6, window_bounds = array<i64: 1, 32>}, {pipeline_mode = #tpu.pipeline_mode<synchronous>, transform_indices = @transform_7, window_bounds = array<i64: 32, 32>}, {pipeline_mode = #tpu.pipeline_mode<synchronous>, transform_indices = @transform_8, window_bounds = array<i64: 1, 32>}, {pipeline_mode = #tpu.pipeline_mode<synchronous>, transform_indices = @transform_9, window_bounds = array<i64: 96, 32>}, {pipeline_mode = #tpu.pipeline_mode<synchronous>, transform_indices = @transform_10, window_bounds = array<i64: 1, 32>}, {pipeline_mode = #tpu.pipeline_mode<synchronous>, transform_indices = @transform_11, window_bounds = array<i64: 32, 32>}, {pipeline_mode = #tpu.pipeline_mode<synchronous>, transform_indices = @transform_12, window_bounds = array<i64: 1, 32>}, {pipeline_mode = #tpu.pipeline_mode<synchronous>, transform_indices = @transform_13, window_bounds = array<i64: 96, 32>}, {pipeline_mode = #tpu.pipeline_mode<synchronous>, transform_indices = @transform_14, window_bounds = array<i64: 1, 32>}, {pipeline_mode = #tpu.pipeline_mode<synchronous>, transform_indices = @transform_15, window_bounds = array<i64: 32, 32>}, {pipeline_mode = #tpu.pipeline_mode<synchronous>, transform_indices = @transform_16, window_bounds = array<i64: 1, 32>}, {transform_indices = @transform_17, window_bounds = array<i64: 1, 8, 32>}]} {
    %c0 = arith.constant 0 : index
    %c0_0 = arith.constant 0 : index
    %c0_1 = arith.constant 0 : index
    %0 = vector.load %arg1[%c0, %c0_0, %c0_1] : memref<1x16x8xf32, #tpu.memory_space<vmem>>, vector<1x16x8xf32>
    %1 = vector.shape_cast %0 : vector<1x16x8xf32> to vector<16x8xf32>
    %c0_2 = arith.constant 0 : index
    %c0_3 = arith.constant 0 : index
    %2 = vector.load %arg2[%c0_2, %c0_3] : memref<24x32xbf16, #tpu.memory_space<vmem>>, vector<24x32xbf16>
    %c0_4 = arith.constant 0 : index
    %c0_5 = arith.constant 0 : index
    %3 = vector.load %arg3[%c0_4, %c0_5] : memref<1x32xf32, #tpu.memory_space<vmem>>, vector<1x32xf32>
    %cst = arith.constant 0.000000e+00 : f32
    %4 = vector.broadcast %cst : f32 to vector<1x8xf32>
    %5 = tpu.concatenate %4, %1, %4 in 0 : vector<1x8xf32>, vector<16x8xf32>, vector<1x8xf32> -> vector<18x8xf32>
    %6 = vector.extract_strided_slice %5 {offsets = [0, 0], sizes = [16, 8], strides = [1, 1]} : vector<18x8xf32> to vector<16x8xf32>
    %7 = vector.extract_strided_slice %5 {offsets = [1, 0], sizes = [16, 8], strides = [1, 1]} : vector<18x8xf32> to vector<16x8xf32>
    %8 = vector.extract_strided_slice %5 {offsets = [2, 0], sizes = [16, 8], strides = [1, 1]} : vector<18x8xf32> to vector<16x8xf32>
    %9 = tpu.concatenate %6, %7, %8 in 1 : vector<16x8xf32>, vector<16x8xf32>, vector<16x8xf32> -> vector<16x24xf32>
    %10 = arith.truncf %9 : vector<16x24xf32> to vector<16x24xbf16>
    %cst_6 = arith.constant dense<0.000000e+00> : vector<16x32xf32>
    %11 = tpu.matmul %10, %2, %cst_6 {dimension_numbers = #tpu.dot_dimension_numbers<[1], [0], [0], [1], [0, 0, 1, 1], [], []>} : vector<16x24xbf16>, vector<24x32xbf16>, vector<16x32xf32> -> vector<16x32xf32>
    %12 = vector.broadcast %3 : vector<1x32xf32> to vector<16x32xf32>
    %13 = arith.addf %11, %12 : vector<16x32xf32>
    %14 = arith.truncf %13 : vector<16x32xf32> to vector<16x32xbf16>
    %cst_7 = arith.constant 0.000000e+00 : bf16
    %15 = vector.broadcast %cst_7 : bf16 to vector<16x32xbf16>
    %16 = arith.maximumf %14, %15 : vector<16x32xbf16>
    %c0_8 = arith.constant 0 : index
    %c0_9 = arith.constant 0 : index
    %17 = vector.load %arg4[%c0_8, %c0_9] : memref<128x32xbf16, #tpu.memory_space<vmem>>, vector<128x32xbf16>
    %c0_10 = arith.constant 0 : index
    %c0_11 = arith.constant 0 : index
    %18 = vector.load %arg5[%c0_10, %c0_11] : memref<1x32xf32, #tpu.memory_space<vmem>>, vector<1x32xf32>
    %cst_12 = arith.constant 0.000000e+00 : bf16
    %19 = vector.broadcast %cst_12 : bf16 to vector<1x32xbf16>
    %20 = tpu.concatenate %19, %16, %19 in 0 : vector<1x32xbf16>, vector<16x32xbf16>, vector<1x32xbf16> -> vector<18x32xbf16>
    %21 = vector.shape_cast %20 : vector<18x32xbf16> to vector<9x2x32xbf16>
    %22 = vector.extract_strided_slice %21 {offsets = [0, 0, 0], sizes = [8, 1, 32], strides = [1, 1, 1]} : vector<9x2x32xbf16> to vector<8x1x32xbf16>
    %23 = vector.shape_cast %22 : vector<8x1x32xbf16> to vector<8x32xbf16>
    %24 = vector.extract_strided_slice %21 {offsets = [0, 1, 0], sizes = [8, 1, 32], strides = [1, 1, 1]} : vector<9x2x32xbf16> to vector<8x1x32xbf16>
    %25 = vector.shape_cast %24 : vector<8x1x32xbf16> to vector<8x32xbf16>
    %26 = vector.extract_strided_slice %21 {offsets = [1, 0, 0], sizes = [8, 1, 32], strides = [1, 1, 1]} : vector<9x2x32xbf16> to vector<8x1x32xbf16>
    %27 = vector.shape_cast %26 : vector<8x1x32xbf16> to vector<8x32xbf16>
    %28 = vector.extract_strided_slice %21 {offsets = [1, 1, 0], sizes = [8, 1, 32], strides = [1, 1, 1]} : vector<9x2x32xbf16> to vector<8x1x32xbf16>
    %29 = vector.shape_cast %28 : vector<8x1x32xbf16> to vector<8x32xbf16>
    %30 = tpu.concatenate %23, %25, %27, %29 in 1 : vector<8x32xbf16>, vector<8x32xbf16>, vector<8x32xbf16>, vector<8x32xbf16> -> vector<8x128xbf16>
    %cst_13 = arith.constant dense<0.000000e+00> : vector<8x32xf32>
    %31 = tpu.matmul %30, %17, %cst_13 {dimension_numbers = #tpu.dot_dimension_numbers<[1], [0], [0], [1], [0, 0, 1, 1], [], []>} : vector<8x128xbf16>, vector<128x32xbf16>, vector<8x32xf32> -> vector<8x32xf32>
    %32 = vector.broadcast %18 : vector<1x32xf32> to vector<8x32xf32>
    %33 = arith.addf %31, %32 : vector<8x32xf32>
    %c0_14 = arith.constant 0 : index
    %c0_15 = arith.constant 0 : index
    %34 = vector.load %arg6[%c0_14, %c0_15] : memref<96x32xbf16, #tpu.memory_space<vmem>>, vector<96x32xbf16>
    %c0_16 = arith.constant 0 : index
    %c0_17 = arith.constant 0 : index
    %35 = vector.load %arg7[%c0_16, %c0_17] : memref<1x32xf32, #tpu.memory_space<vmem>>, vector<1x32xf32>
    %c0_18 = arith.constant 0 : index
    %c0_19 = arith.constant 0 : index
    %36 = vector.load %arg8[%c0_18, %c0_19] : memref<32x32xbf16, #tpu.memory_space<vmem>>, vector<32x32xbf16>
    %c0_20 = arith.constant 0 : index
    %c0_21 = arith.constant 0 : index
    %37 = vector.load %arg9[%c0_20, %c0_21] : memref<1x32xf32, #tpu.memory_space<vmem>>, vector<1x32xf32>
    %38 = arith.truncf %33 : vector<8x32xf32> to vector<8x32xbf16>
    %cst_22 = arith.constant 0.000000e+00 : bf16
    %39 = vector.broadcast %cst_22 : bf16 to vector<8x32xbf16>
    %40 = arith.maximumf %38, %39 : vector<8x32xbf16>
    %cst_23 = arith.constant 0.000000e+00 : bf16
    %41 = vector.broadcast %cst_23 : bf16 to vector<9x32xbf16>
    %42 = tpu.concatenate %41, %40, %41 in 0 : vector<9x32xbf16>, vector<8x32xbf16>, vector<9x32xbf16> -> vector<26x32xbf16>
    %43 = vector.extract_strided_slice %42 {offsets = [0, 0], sizes = [8, 32], strides = [1, 1]} : vector<26x32xbf16> to vector<8x32xbf16>
    %44 = vector.extract_strided_slice %42 {offsets = [9, 0], sizes = [8, 32], strides = [1, 1]} : vector<26x32xbf16> to vector<8x32xbf16>
    %45 = vector.extract_strided_slice %42 {offsets = [18, 0], sizes = [8, 32], strides = [1, 1]} : vector<26x32xbf16> to vector<8x32xbf16>
    %46 = tpu.concatenate %43, %44, %45 in 1 : vector<8x32xbf16>, vector<8x32xbf16>, vector<8x32xbf16> -> vector<8x96xbf16>
    %cst_24 = arith.constant dense<0.000000e+00> : vector<8x32xf32>
    %47 = tpu.matmul %46, %34, %cst_24 {dimension_numbers = #tpu.dot_dimension_numbers<[1], [0], [0], [1], [0, 0, 1, 1], [], []>} : vector<8x96xbf16>, vector<96x32xbf16>, vector<8x32xf32> -> vector<8x32xf32>
    %48 = vector.broadcast %35 : vector<1x32xf32> to vector<8x32xf32>
    %49 = arith.addf %47, %48 : vector<8x32xf32>
    %50 = arith.truncf %49 : vector<8x32xf32> to vector<8x32xbf16>
    %cst_25 = arith.constant 0.000000e+00 : bf16
    %51 = vector.broadcast %cst_25 : bf16 to vector<8x32xbf16>
    %52 = arith.maximumf %50, %51 : vector<8x32xbf16>
    %cst_26 = arith.constant dense<0.000000e+00> : vector<8x32xf32>
    %53 = tpu.matmul %52, %36, %cst_26 {dimension_numbers = #tpu.dot_dimension_numbers<[1], [0], [0], [1], [0, 0, 1, 1], [], []>} : vector<8x32xbf16>, vector<32x32xbf16>, vector<8x32xf32> -> vector<8x32xf32>
    %54 = vector.broadcast %37 : vector<1x32xf32> to vector<8x32xf32>
    %55 = arith.addf %53, %54 : vector<8x32xf32>
    %56 = arith.addf %55, %33 : vector<8x32xf32>
    %c0_27 = arith.constant 0 : index
    %c0_28 = arith.constant 0 : index
    %57 = vector.load %arg10[%c0_27, %c0_28] : memref<96x32xbf16, #tpu.memory_space<vmem>>, vector<96x32xbf16>
    %c0_29 = arith.constant 0 : index
    %c0_30 = arith.constant 0 : index
    %58 = vector.load %arg11[%c0_29, %c0_30] : memref<1x32xf32, #tpu.memory_space<vmem>>, vector<1x32xf32>
    %c0_31 = arith.constant 0 : index
    %c0_32 = arith.constant 0 : index
    %59 = vector.load %arg12[%c0_31, %c0_32] : memref<32x32xbf16, #tpu.memory_space<vmem>>, vector<32x32xbf16>
    %c0_33 = arith.constant 0 : index
    %c0_34 = arith.constant 0 : index
    %60 = vector.load %arg13[%c0_33, %c0_34] : memref<1x32xf32, #tpu.memory_space<vmem>>, vector<1x32xf32>
    %61 = arith.truncf %56 : vector<8x32xf32> to vector<8x32xbf16>
    %cst_35 = arith.constant 0.000000e+00 : bf16
    %62 = vector.broadcast %cst_35 : bf16 to vector<8x32xbf16>
    %63 = arith.maximumf %61, %62 : vector<8x32xbf16>
    %cst_36 = arith.constant 0.000000e+00 : bf16
    %64 = vector.broadcast %cst_36 : bf16 to vector<3x32xbf16>
    %65 = tpu.concatenate %64, %63, %64 in 0 : vector<3x32xbf16>, vector<8x32xbf16>, vector<3x32xbf16> -> vector<14x32xbf16>
    %66 = vector.extract_strided_slice %65 {offsets = [0, 0], sizes = [8, 32], strides = [1, 1]} : vector<14x32xbf16> to vector<8x32xbf16>
    %67 = vector.extract_strided_slice %65 {offsets = [3, 0], sizes = [8, 32], strides = [1, 1]} : vector<14x32xbf16> to vector<8x32xbf16>
    %68 = vector.extract_strided_slice %65 {offsets = [6, 0], sizes = [8, 32], strides = [1, 1]} : vector<14x32xbf16> to vector<8x32xbf16>
    %69 = tpu.concatenate %66, %67, %68 in 1 : vector<8x32xbf16>, vector<8x32xbf16>, vector<8x32xbf16> -> vector<8x96xbf16>
    %cst_37 = arith.constant dense<0.000000e+00> : vector<8x32xf32>
    %70 = tpu.matmul %69, %57, %cst_37 {dimension_numbers = #tpu.dot_dimension_numbers<[1], [0], [0], [1], [0, 0, 1, 1], [], []>} : vector<8x96xbf16>, vector<96x32xbf16>, vector<8x32xf32> -> vector<8x32xf32>
    %71 = vector.broadcast %58 : vector<1x32xf32> to vector<8x32xf32>
    %72 = arith.addf %70, %71 : vector<8x32xf32>
    %73 = arith.truncf %72 : vector<8x32xf32> to vector<8x32xbf16>
    %cst_38 = arith.constant 0.000000e+00 : bf16
    %74 = vector.broadcast %cst_38 : bf16 to vector<8x32xbf16>
    %75 = arith.maximumf %73, %74 : vector<8x32xbf16>
    %cst_39 = arith.constant dense<0.000000e+00> : vector<8x32xf32>
    %76 = tpu.matmul %75, %59, %cst_39 {dimension_numbers = #tpu.dot_dimension_numbers<[1], [0], [0], [1], [0, 0, 1, 1], [], []>} : vector<8x32xbf16>, vector<32x32xbf16>, vector<8x32xf32> -> vector<8x32xf32>
    %77 = vector.broadcast %60 : vector<1x32xf32> to vector<8x32xf32>
    %78 = arith.addf %76, %77 : vector<8x32xf32>
    %79 = arith.addf %78, %56 : vector<8x32xf32>
    %c0_40 = arith.constant 0 : index
    %c0_41 = arith.constant 0 : index
    %80 = vector.load %arg14[%c0_40, %c0_41] : memref<96x32xbf16, #tpu.memory_space<vmem>>, vector<96x32xbf16>
    %c0_42 = arith.constant 0 : index
    %c0_43 = arith.constant 0 : index
    %81 = vector.load %arg15[%c0_42, %c0_43] : memref<1x32xf32, #tpu.memory_space<vmem>>, vector<1x32xf32>
    %c0_44 = arith.constant 0 : index
    %c0_45 = arith.constant 0 : index
    %82 = vector.load %arg16[%c0_44, %c0_45] : memref<32x32xbf16, #tpu.memory_space<vmem>>, vector<32x32xbf16>
    %c0_46 = arith.constant 0 : index
    %c0_47 = arith.constant 0 : index
    %83 = vector.load %arg17[%c0_46, %c0_47] : memref<1x32xf32, #tpu.memory_space<vmem>>, vector<1x32xf32>
    %84 = arith.truncf %79 : vector<8x32xf32> to vector<8x32xbf16>
    %cst_48 = arith.constant 0.000000e+00 : bf16
    %85 = vector.broadcast %cst_48 : bf16 to vector<8x32xbf16>
    %86 = arith.maximumf %84, %85 : vector<8x32xbf16>
    %cst_49 = arith.constant 0.000000e+00 : bf16
    %87 = vector.broadcast %cst_49 : bf16 to vector<1x32xbf16>
    %88 = tpu.concatenate %87, %86, %87 in 0 : vector<1x32xbf16>, vector<8x32xbf16>, vector<1x32xbf16> -> vector<10x32xbf16>
    %89 = vector.extract_strided_slice %88 {offsets = [0, 0], sizes = [8, 32], strides = [1, 1]} : vector<10x32xbf16> to vector<8x32xbf16>
    %90 = vector.extract_strided_slice %88 {offsets = [1, 0], sizes = [8, 32], strides = [1, 1]} : vector<10x32xbf16> to vector<8x32xbf16>
    %91 = vector.extract_strided_slice %88 {offsets = [2, 0], sizes = [8, 32], strides = [1, 1]} : vector<10x32xbf16> to vector<8x32xbf16>
    %92 = tpu.concatenate %89, %90, %91 in 1 : vector<8x32xbf16>, vector<8x32xbf16>, vector<8x32xbf16> -> vector<8x96xbf16>
    %cst_50 = arith.constant dense<0.000000e+00> : vector<8x32xf32>
    %93 = tpu.matmul %92, %80, %cst_50 {dimension_numbers = #tpu.dot_dimension_numbers<[1], [0], [0], [1], [0, 0, 1, 1], [], []>} : vector<8x96xbf16>, vector<96x32xbf16>, vector<8x32xf32> -> vector<8x32xf32>
    %94 = vector.broadcast %81 : vector<1x32xf32> to vector<8x32xf32>
    %95 = arith.addf %93, %94 : vector<8x32xf32>
    %96 = arith.truncf %95 : vector<8x32xf32> to vector<8x32xbf16>
    %cst_51 = arith.constant 0.000000e+00 : bf16
    %97 = vector.broadcast %cst_51 : bf16 to vector<8x32xbf16>
    %98 = arith.maximumf %96, %97 : vector<8x32xbf16>
    %cst_52 = arith.constant dense<0.000000e+00> : vector<8x32xf32>
    %99 = tpu.matmul %98, %82, %cst_52 {dimension_numbers = #tpu.dot_dimension_numbers<[1], [0], [0], [1], [0, 0, 1, 1], [], []>} : vector<8x32xbf16>, vector<32x32xbf16>, vector<8x32xf32> -> vector<8x32xf32>
    %100 = vector.broadcast %83 : vector<1x32xf32> to vector<8x32xf32>
    %101 = arith.addf %99, %100 : vector<8x32xf32>
    %102 = arith.addf %101, %79 : vector<8x32xf32>
    %103 = arith.truncf %102 : vector<8x32xf32> to vector<8x32xbf16>
    %c0_53 = arith.constant 0 : index
    %c0_54 = arith.constant 0 : index
    %c0_55 = arith.constant 0 : index
    %104 = vector.load %arg18[%c0_53, %c0_54, %c0_55] : memref<1x8x32xbf16, #tpu.memory_space<vmem>>, vector<1x8x32xbf16>
    %105 = vector.shape_cast %104 : vector<1x8x32xbf16> to vector<8x32xbf16>
    %106 = vector.shape_cast %103 : vector<8x32xbf16> to vector<1x8x32xbf16>
    tpu.vector_store %arg18[%c0_53, %c0_54, %c0_55], %106 {strides = array<i32>} : memref<1x8x32xbf16, #tpu.memory_space<vmem>>, vector<1x8x32xbf16>,
    return
  }
  func.func @transform_0(%arg0: i32) -> (i32, i32, i32) {
    %c0_i32 = arith.constant 0 : i32
    %c0_i32_0 = arith.constant 0 : i32
    %c0_i32_1 = arith.constant 0 : i32
    return %arg0, %c0_i32, %c0_i32_0 : i32, i32, i32
  }
  func.func @transform_1(%arg0: i32) -> (i32, i32) {
    %c0_i32 = arith.constant 0 : i32
    %c0_i32_0 = arith.constant 0 : i32
    %c0_i32_1 = arith.constant 0 : i32
    return %c0_i32, %c0_i32_0 : i32, i32
  }
  func.func @transform_2(%arg0: i32) -> (i32, i32) {
    %c0_i32 = arith.constant 0 : i32
    %c0_i32_0 = arith.constant 0 : i32
    %c0_i32_1 = arith.constant 0 : i32
    return %c0_i32, %c0_i32_0 : i32, i32
  }
  func.func @transform_3(%arg0: i32) -> (i32, i32) {
    %c0_i32 = arith.constant 0 : i32
    %c0_i32_0 = arith.constant 0 : i32
    %c0_i32_1 = arith.constant 0 : i32
    return %c0_i32, %c0_i32_0 : i32, i32
  }
  func.func @transform_4(%arg0: i32) -> (i32, i32) {
    %c0_i32 = arith.constant 0 : i32
    %c0_i32_0 = arith.constant 0 : i32
    %c0_i32_1 = arith.constant 0 : i32
    return %c0_i32, %c0_i32_0 : i32, i32
  }
  func.func @transform_5(%arg0: i32) -> (i32, i32) {
    %c0_i32 = arith.constant 0 : i32
    %c0_i32_0 = arith.constant 0 : i32
    %c0_i32_1 = arith.constant 0 : i32
    return %c0_i32, %c0_i32_0 : i32, i32
  }
  func.func @transform_6(%arg0: i32) -> (i32, i32) {
    %c0_i32 = arith.constant 0 : i32
    %c0_i32_0 = arith.constant 0 : i32
    %c0_i32_1 = arith.constant 0 : i32
    return %c0_i32, %c0_i32_0 : i32, i32
  }
  func.func @transform_7(%arg0: i32) -> (i32, i32) {
    %c0_i32 = arith.constant 0 : i32
    %c0_i32_0 = arith.constant 0 : i32
    %c0_i32_1 = arith.constant 0 : i32
    return %c0_i32, %c0_i32_0 : i32, i32
  }
  func.func @transform_8(%arg0: i32) -> (i32, i32) {
    %c0_i32 = arith.constant 0 : i32
    %c0_i32_0 = arith.constant 0 : i32
    %c0_i32_1 = arith.constant 0 : i32
    return %c0_i32, %c0_i32_0 : i32, i32
  }
  func.func @transform_9(%arg0: i32) -> (i32, i32) {
    %c0_i32 = arith.constant 0 : i32
    %c0_i32_0 = arith.constant 0 : i32
    %c0_i32_1 = arith.constant 0 : i32
    return %c0_i32, %c0_i32_0 : i32, i32
  }
  func.func @transform_10(%arg0: i32) -> (i32, i32) {
    %c0_i32 = arith.constant 0 : i32
    %c0_i32_0 = arith.constant 0 : i32
    %c0_i32_1 = arith.constant 0 : i32
    return %c0_i32, %c0_i32_0 : i32, i32
  }
  func.func @transform_11(%arg0: i32) -> (i32, i32) {
    %c0_i32 = arith.constant 0 : i32
    %c0_i32_0 = arith.constant 0 : i32
    %c0_i32_1 = arith.constant 0 : i32
    return %c0_i32, %c0_i32_0 : i32, i32
  }
  func.func @transform_12(%arg0: i32) -> (i32, i32) {
    %c0_i32 = arith.constant 0 : i32
    %c0_i32_0 = arith.constant 0 : i32
    %c0_i32_1 = arith.constant 0 : i32
    return %c0_i32, %c0_i32_0 : i32, i32
  }
  func.func @transform_13(%arg0: i32) -> (i32, i32) {
    %c0_i32 = arith.constant 0 : i32
    %c0_i32_0 = arith.constant 0 : i32
    %c0_i32_1 = arith.constant 0 : i32
    return %c0_i32, %c0_i32_0 : i32, i32
  }
  func.func @transform_14(%arg0: i32) -> (i32, i32) {
    %c0_i32 = arith.constant 0 : i32
    %c0_i32_0 = arith.constant 0 : i32
    %c0_i32_1 = arith.constant 0 : i32
    return %c0_i32, %c0_i32_0 : i32, i32
  }
  func.func @transform_15(%arg0: i32) -> (i32, i32) {
    %c0_i32 = arith.constant 0 : i32
    %c0_i32_0 = arith.constant 0 : i32
    %c0_i32_1 = arith.constant 0 : i32
    return %c0_i32, %c0_i32_0 : i32, i32
  }
  func.func @transform_16(%arg0: i32) -> (i32, i32) {
    %c0_i32 = arith.constant 0 : i32
    %c0_i32_0 = arith.constant 0 : i32
    %c0_i32_1 = arith.constant 0 : i32
    return %c0_i32, %c0_i32_0 : i32, i32
  }
  func.func @transform_17(%arg0: i32) -> (i32, i32, i32) {
    %c0_i32 = arith.constant 0 : i32
    %c0_i32_0 = arith.constant 0 : i32
    %c0_i32_1 = arith.constant 0 : i32
    return %arg0, %c0_i32, %c0_i32_0 : i32, i32, i32
  }
}

</mosaic_0001>

<llo_original>
// kernel: tpu_custom_call.1
$region0: #{tpu_custom_call.1}
  #allocation0 [shape = 'u32[]', space=smem, size = 0x4, offset = 0x4, fixed_abs, tag = 'smem constant byte address 0x4 - core index']
  #allocation1 [shape = 'u32[72,128]{1,0:T(1,128)}', space=vmem, size = 0x9000, scoped, tag = 'internal scratch']
  %s0 = inlined_call_operand.vmem [shape: f32[2,16,8], index: 0, kind: input, shape index: {}]
  %s1 = inlined_call_operand.vmem [shape: bf16[24,32], index: 1, kind: input, shape index: {}]
  %s2 = inlined_call_operand.vmem [shape: f32[1,32], index: 2, kind: input, shape index: {}]
  %s3 = inlined_call_operand.vmem [shape: bf16[128,32], index: 3, kind: input, shape index: {}]
  %s4 = inlined_call_operand.vmem [shape: f32[1,32], index: 4, kind: input, shape index: {}]
  %s5 = inlined_call_operand.vmem [shape: bf16[96,32], index: 5, kind: input, shape index: {}]
  %s6 = inlined_call_operand.vmem [shape: f32[1,32], index: 6, kind: input, shape index: {}]
  %s7 = inlined_call_operand.vmem [shape: bf16[32,32], index: 7, kind: input, shape index: {}]
  %s8 = inlined_call_operand.vmem [shape: f32[1,32], index: 8, kind: input, shape index: {}]
  %s9 = inlined_call_operand.vmem [shape: bf16[96,32], index: 9, kind: input, shape index: {}]
  %s10 = inlined_call_operand.vmem [shape: f32[1,32], index: 10, kind: input, shape index: {}]
  %s11 = inlined_call_operand.vmem [shape: bf16[32,32], index: 11, kind: input, shape index: {}]
  %s12 = inlined_call_operand.vmem [shape: f32[1,32], index: 12, kind: input, shape index: {}]
  %s13 = inlined_call_operand.vmem [shape: bf16[96,32], index: 13, kind: input, shape index: {}]
  %s14 = inlined_call_operand.vmem [shape: f32[1,32], index: 14, kind: input, shape index: {}]
  %s15 = inlined_call_operand.vmem [shape: bf16[32,32], index: 15, kind: input, shape index: {}]
  %s16 = inlined_call_operand.vmem [shape: f32[1,32], index: 16, kind: input, shape index: {}]
  %s17 = inlined_call_operand.hbm [shape: bf16[2,8,32], index: 17, kind: output, shape index: {}]
  %s18 = sld [smem:[#allocation0]]
  $region101: #{tpu_custom_call.1} parent=0
    _
  %s20 = ssub.s32 1, %s18
  %s21 = scalar_select 0, %s20, %s18
  $region1: #{tpu_custom_call.1} parent=0
    #allocation2 [shape = 'u8[4096]{0}', space=vmem, size = 0x1000, scoped, tag = 'output window, operand 0']
    #allocation3 [shape = 's32[2]{0}', space=sflag, size = 0x8, scoped, tag = 'scoped memory for tpu_custom_call.1']
    %22 = vsyncpa [#allocation3], 0
    %s23 = scalar_lea.sflag [#allocation3], 1
    %24 = vsyncpa %s23, 0
    loop: start=0, step=1, limit=4
    $region2: #{tpu_custom_call.1} parent=1 // loop_pre_header
      _
    $region3: #{tpu_custom_call.1} parent=1 // loop_header
      %s26 = sphi 0, %s30
      %p27 = scmp.ge.s32.totalorder %s26, 4
      %s36 = sphi 0, %s38
      %s39 = sphi 0, %s36
      %s40 = sphi 0, %s39
      %s56 = sphi 0, %s40
      %s60 = sphi 0, %s60
      %s62 = sphi 0, %s60
      %s63 = sphi 0, %s62
      %s77 = sphi 0, %s63
      %s81 = sphi 0, %s81
      %s83 = sphi 0, %s81
      %s84 = sphi 0, %s83
      %s98 = sphi 0, %s84
      %s102 = sphi 0, %s102
      %s104 = sphi 0, %s102
      %s105 = sphi 0, %s104
      %s119 = sphi 0, %s105
      %s123 = sphi 0, %s123
      %s125 = sphi 0, %s123
      %s126 = sphi 0, %s125
      %s140 = sphi 0, %s126
      %s144 = sphi 0, %s144
      %s146 = sphi 0, %s144
      %s147 = sphi 0, %s146
      %s161 = sphi 0, %s147
      %s165 = sphi 0, %s165
      %s167 = sphi 0, %s165
      %s168 = sphi 0, %s167
      %s182 = sphi 0, %s168
      %s186 = sphi 0, %s186
      %s188 = sphi 0, %s186
      %s189 = sphi 0, %s188
      %s203 = sphi 0, %s189
      %s207 = sphi 0, %s207
      %s209 = sphi 0, %s207
      %s210 = sphi 0, %s209
      %s224 = sphi 0, %s210
      %s228 = sphi 0, %s228
      %s230 = sphi 0, %s228
      %s231 = sphi 0, %s230
      %s245 = sphi 0, %s231
      %s249 = sphi 0, %s249
      %s251 = sphi 0, %s249
      %s252 = sphi 0, %s251
      %s266 = sphi 0, %s252
      %s270 = sphi 0, %s270
      %s272 = sphi 0, %s270
      %s273 = sphi 0, %s272
      %s287 = sphi 0, %s273
      %s291 = sphi 0, %s291
      %s293 = sphi 0, %s291
      %s294 = sphi 0, %s293
      %s308 = sphi 0, %s294
      %s312 = sphi 0, %s312
      %s314 = sphi 0, %s312
      %s315 = sphi 0, %s314
      %s329 = sphi 0, %s315
      %s333 = sphi 0, %s333
      %s335 = sphi 0, %s333
      %s336 = sphi 0, %s335
      %s350 = sphi 0, %s336
      %s354 = sphi 0, %s354
      %s356 = sphi 0, %s354
      %s357 = sphi 0, %s356
      %s371 = sphi 0, %s357
      %s375 = sphi 0, %s375
      %s377 = sphi 0, %s375
      %s378 = sphi 0, %s377
      %s392 = sphi 0, %s378
      %s398 = sphi 0, %s400
      %s401 = sphi 0, %s398
      %s402 = sphi 0, %s401
      %s418 = sphi 0, %s402
    $region4: #{tpu_custom_call.1} parent=1 // loop_header_branch
      %29 = sbr.rel (%p27) target = $region8
    $region5: #{tpu_custom_call.1} parent=1 // loop_body
      %s31 = ssub.s32 %s26, 1
      %s32 = ssub.s32 %s26, 2
      %s33 = sadd.s32 %s26, 1
      %s34 = ssub.s32 %s26, %s33
      %p35 = scmp.eq.s32.totalorder %s34, 0
      %s37 = sadd.s32 %s36, 1
      %s38 = scalar_select %p35, %s36, %s37
      %p41 = pneg %p35
      %p42 = scmp.eq.s32.totalorder %s26, 1
      %p43 = por %p41, %p42
      %p44 = scmp.ne.s32.totalorder %s36, %s39
      %p45 = scmp.eq.s32.totalorder %s26, 0
      %p46 = por %p44, %p45
      %p47 = scmp.ne.s32.totalorder %s36, %s39
      %p48 = scmp.eq.s32.totalorder %s31, 1
      %p49 = por %p47, %p48
      %p50 = scmp.ne.s32.totalorder %s39, %s40
      %p51 = scmp.eq.s32.totalorder %s31, 0
      %p52 = por %p50, %p51
      %p53 = scmp.ne.s32.totalorder %s39, %s40
      %p54 = scmp.eq.s32.totalorder %s32, 1
      %p55 = por %p53, %p54
      %p57 = scmp.ne.s32.totalorder %s40, %s56
      %p58 = scmp.eq.s32.totalorder %s32, 0
      %p59 = por %p57, %p58
      %s61 = sadd.s32 %s60, 1
      %p64 = scmp.eq.s32.totalorder %s26, 1
      %p65 = scmp.ne.s32.totalorder %s60, %s62
      %p66 = scmp.eq.s32.totalorder %s26, 0
      %p67 = por %p65, %p66
      %p68 = scmp.ne.s32.totalorder %s60, %s62
      %p69 = scmp.eq.s32.totalorder %s31, 1
      %p70 = por %p68, %p69
      %p71 = scmp.ne.s32.totalorder %s62, %s63
      %p72 = scmp.eq.s32.totalorder %s31, 0
      %p73 = por %p71, %p72
      %p74 = scmp.ne.s32.totalorder %s62, %s63
      %p75 = scmp.eq.s32.totalorder %s32, 1
      %p76 = por %p74, %p75
      %p78 = scmp.ne.s32.totalorder %s63, %s77
      %p79 = scmp.eq.s32.totalorder %s32, 0
      %p80 = por %p78, %p79
      %s82 = sadd.s32 %s81, 1
      %p85 = scmp.eq.s32.totalorder %s26, 1
      %p86 = scmp.ne.s32.totalorder %s81, %s83
      %p87 = scmp.eq.s32.totalorder %s26, 0
      %p88 = por %p86, %p87
      %p89 = scmp.ne.s32.totalorder %s81, %s83
      %p90 = scmp.eq.s32.totalorder %s31, 1
      %p91 = por %p89, %p90
      %p92 = scmp.ne.s32.totalorder %s83, %s84
      %p93 = scmp.eq.s32.totalorder %s31, 0
      %p94 = por %p92, %p93
      %p95 = scmp.ne.s32.totalorder %s83, %s84
      %p96 = scmp.eq.s32.totalorder %s32, 1
      %p97 = por %p95, %p96
      %p99 = scmp.ne.s32.totalorder %s84, %s98
      %p100 = scmp.eq.s32.totalorder %s32, 0
      %p101 = por %p99, %p100
      %s103 = sadd.s32 %s102, 1
      %p106 = scmp.eq.s32.totalorder %s26, 1
      %p107 = scmp.ne.s32.totalorder %s102, %s104
      %p108 = scmp.eq.s32.totalorder %s26, 0
      %p109 = por %p107, %p108
      %p110 = scmp.ne.s32.totalorder %s102, %s104
      %p111 = scmp.eq.s32.totalorder %s31, 1
      %p112 = por %p110, %p111
      %p113 = scmp.ne.s32.totalorder %s104, %s105
      %p114 = scmp.eq.s32.totalorder %s31, 0
      %p115 = por %p113, %p114
      %p116 = scmp.ne.s32.totalorder %s104, %s105
      %p117 = scmp.eq.s32.totalorder %s32, 1
      %p118 = por %p116, %p117
      %p120 = scmp.ne.s32.totalorder %s105, %s119
      %p121 = scmp.eq.s32.totalorder %s32, 0
      %p122 = por %p120, %p121
      %s124 = sadd.s32 %s123, 1
      %p127 = scmp.eq.s32.totalorder %s26, 1
      %p128 = scmp.ne.s32.totalorder %s123, %s125
      %p129 = scmp.eq.s32.totalorder %s26, 0
      %p130 = por %p128, %p129
      %p131 = scmp.ne.s32.totalorder %s123, %s125
      %p132 = scmp.eq.s32.totalorder %s31, 1
      %p133 = por %p131, %p132
      %p134 = scmp.ne.s32.totalorder %s125, %s126
      %p135 = scmp.eq.s32.totalorder %s31, 0
      %p136 = por %p134, %p135
      %p137 = scmp.ne.s32.totalorder %s125, %s126
      %p138 = scmp.eq.s32.totalorder %s32, 1
      %p139 = por %p137, %p138
      %p141 = scmp.ne.s32.totalorder %s126, %s140
      %p142 = scmp.eq.s32.totalorder %s32, 0
      %p143 = por %p141, %p142
      %s145 = sadd.s32 %s144, 1
      %p148 = scmp.eq.s32.totalorder %s26, 1
      %p149 = scmp.ne.s32.totalorder %s144, %s146
      %p150 = scmp.eq.s32.totalorder %s26, 0
      %p151 = por %p149, %p150
      %p152 = scmp.ne.s32.totalorder %s144, %s146
      %p153 = scmp.eq.s32.totalorder %s31, 1
      %p154 = por %p152, %p153
      %p155 = scmp.ne.s32.totalorder %s146, %s147
      %p156 = scmp.eq.s32.totalorder %s31, 0
      %p157 = por %p155, %p156
      %p158 = scmp.ne.s32.totalorder %s146, %s147
      %p159 = scmp.eq.s32.totalorder %s32, 1
      %p160 = por %p158, %p159
      %p162 = scmp.ne.s32.totalorder %s147, %s161
      %p163 = scmp.eq.s32.totalorder %s32, 0
      %p164 = por %p162, %p163
      %s166 = sadd.s32 %s165, 1
      %p169 = scmp.eq.s32.totalorder %s26, 1
      %p170 = scmp.ne.s32.totalorder %s165, %s167
      %p171 = scmp.eq.s32.totalorder %s26, 0
      %p172 = por %p170, %p171
      %p173 = scmp.ne.s32.totalorder %s165, %s167
      %p174 = scmp.eq.s32.totalorder %s31, 1
      %p175 = por %p173, %p174
      %p176 = scmp.ne.s32.totalorder %s167, %s168
      %p177 = scmp.eq.s32.totalorder %s31, 0
      %p178 = por %p176, %p177
      %p179 = scmp.ne.s32.totalorder %s167, %s168
      %p180 = scmp.eq.s32.totalorder %s32, 1
      %p181 = por %p179, %p180
      %p183 = scmp.ne.s32.totalorder %s168, %s182
      %p184 = scmp.eq.s32.totalorder %s32, 0
      %p185 = por %p183, %p184
      %s187 = sadd.s32 %s186, 1
      %p190 = scmp.eq.s32.totalorder %s26, 1
      %p191 = scmp.ne.s32.totalorder %s186, %s188
      %p192 = scmp.eq.s32.totalorder %s26, 0
      %p193 = por %p191, %p192
      %p194 = scmp.ne.s32.totalorder %s186, %s188
      %p195 = scmp.eq.s32.totalorder %s31, 1
      %p196 = por %p194, %p195
      %p197 = scmp.ne.s32.totalorder %s188, %s189
      %p198 = scmp.eq.s32.totalorder %s31, 0
      %p199 = por %p197, %p198
      %p200 = scmp.ne.s32.totalorder %s188, %s189
      %p201 = scmp.eq.s32.totalorder %s32, 1
      %p202 = por %p200, %p201
      %p204 = scmp.ne.s32.totalorder %s189, %s203
      %p205 = scmp.eq.s32.totalorder %s32, 0
      %p206 = por %p204, %p205
      %s208 = sadd.s32 %s207, 1
      %p211 = scmp.eq.s32.totalorder %s26, 1
      %p212 = scmp.ne.s32.totalorder %s207, %s209
      %p213 = scmp.eq.s32.totalorder %s26, 0
      %p214 = por %p212, %p213
      %p215 = scmp.ne.s32.totalorder %s207, %s209
      %p216 = scmp.eq.s32.totalorder %s31, 1
      %p217 = por %p215, %p216
      %p218 = scmp.ne.s32.totalorder %s209, %s210
      %p219 = scmp.eq.s32.totalorder %s31, 0
      %p220 = por %p218, %p219
      %p221 = scmp.ne.s32.totalorder %s209, %s210
      %p222 = scmp.eq.s32.totalorder %s32, 1
      %p223 = por %p221, %p222
      %p225 = scmp.ne.s32.totalorder %s210, %s224
      %p226 = scmp.eq.s32.totalorder %s32, 0
      %p227 = por %p225, %p226
      %s229 = sadd.s32 %s228, 1
      %p232 = scmp.eq.s32.totalorder %s26, 1
      %p233 = scmp.ne.s32.totalorder %s228, %s230
      %p234 = scmp.eq.s32.totalorder %s26, 0
      %p235 = por %p233, %p234
      %p236 = scmp.ne.s32.totalorder %s228, %s230
      %p237 = scmp.eq.s32.totalorder %s31, 1
      %p238 = por %p236, %p237
      %p239 = scmp.ne.s32.totalorder %s230, %s231
      %p240 = scmp.eq.s32.totalorder %s31, 0
      %p241 = por %p239, %p240
      %p242 = scmp.ne.s32.totalorder %s230, %s231
      %p243 = scmp.eq.s32.totalorder %s32, 1
      %p244 = por %p242, %p243
      %p246 = scmp.ne.s32.totalorder %s231, %s245
      %p247 = scmp.eq.s32.totalorder %s32, 0
      %p248 = por %p246, %p247
      %s250 = sadd.s32 %s249, 1
      %p253 = scmp.eq.s32.totalorder %s26, 1
      %p254 = scmp.ne.s32.totalorder %s249, %s251
      %p255 = scmp.eq.s32.totalorder %s26, 0
      %p256 = por %p254, %p255
      %p257 = scmp.ne.s32.totalorder %s249, %s251
      %p258 = scmp.eq.s32.totalorder %s31, 1
      %p259 = por %p257, %p258
      %p260 = scmp.ne.s32.totalorder %s251, %s252
      %p261 = scmp.eq.s32.totalorder %s31, 0
      %p262 = por %p260, %p261
      %p263 = scmp.ne.s32.totalorder %s251, %s252
      %p264 = scmp.eq.s32.totalorder %s32, 1
      %p265 = por %p263, %p264
      %p267 = scmp.ne.s32.totalorder %s252, %s266
      %p268 = scmp.eq.s32.totalorder %s32, 0
      %p269 = por %p267, %p268
      %s271 = sadd.s32 %s270, 1
      %p274 = scmp.eq.s32.totalorder %s26, 1
      %p275 = scmp.ne.s32.totalorder %s270, %s272
      %p276 = scmp.eq.s32.totalorder %s26, 0
      %p277 = por %p275, %p276
      %p278 = scmp.ne.s32.totalorder %s270, %s272
      %p279 = scmp.eq.s32.totalorder %s31, 1
      %p280 = por %p278, %p279
      %p281 = scmp.ne.s32.totalorder %s272, %s273
      %p282 = scmp.eq.s32.totalorder %s31, 0
      %p283 = por %p281, %p282
      %p284 = scmp.ne.s32.totalorder %s272, %s273
      %p285 = scmp.eq.s32.totalorder %s32, 1
      %p286 = por %p284, %p285
      %p288 = scmp.ne.s32.totalorder %s273, %s287
      %p289 = scmp.eq.s32.totalorder %s32, 0
      %p290 = por %p288, %p289
      %s292 = sadd.s32 %s291, 1
      %p295 = scmp.eq.s32.totalorder %s26, 1
      %p296 = scmp.ne.s32.totalorder %s291, %s293
      %p297 = scmp.eq.s32.totalorder %s26, 0
      %p298 = por %p296, %p297
      %p299 = scmp.ne.s32.totalorder %s291, %s293
      %p300 = scmp.eq.s32.totalorder %s31, 1
      %p301 = por %p299, %p300
      %p302 = scmp.ne.s32.totalorder %s293, %s294
      %p303 = scmp.eq.s32.totalorder %s31, 0
      %p304 = por %p302, %p303
      %p305 = scmp.ne.s32.totalorder %s293, %s294
      %p306 = scmp.eq.s32.totalorder %s32, 1
      %p307 = por %p305, %p306
      %p309 = scmp.ne.s32.totalorder %s294, %s308
      %p310 = scmp.eq.s32.totalorder %s32, 0
      %p311 = por %p309, %p310
      %s313 = sadd.s32 %s312, 1
      %p316 = scmp.eq.s32.totalorder %s26, 1
      %p317 = scmp.ne.s32.totalorder %s312, %s314
      %p318 = scmp.eq.s32.totalorder %s26, 0
      %p319 = por %p317, %p318
      %p320 = scmp.ne.s32.totalorder %s312, %s314
      %p321 = scmp.eq.s32.totalorder %s31, 1
      %p322 = por %p320, %p321
      %p323 = scmp.ne.s32.totalorder %s314, %s315
      %p324 = scmp.eq.s32.totalorder %s31, 0
      %p325 = por %p323, %p324
      %p326 = scmp.ne.s32.totalorder %s314, %s315
      %p327 = scmp.eq.s32.totalorder %s32, 1
      %p328 = por %p326, %p327
      %p330 = scmp.ne.s32.totalorder %s315, %s329
      %p331 = scmp.eq.s32.totalorder %s32, 0
      %p332 = por %p330, %p331
      %s334 = sadd.s32 %s333, 1
      %p337 = scmp.eq.s32.totalorder %s26, 1
      %p338 = scmp.ne.s32.totalorder %s333, %s335
      %p339 = scmp.eq.s32.totalorder %s26, 0
      %p340 = por %p338, %p339
      %p341 = scmp.ne.s32.totalorder %s333, %s335
      %p342 = scmp.eq.s32.totalorder %s31, 1
      %p343 = por %p341, %p342
      %p344 = scmp.ne.s32.totalorder %s335, %s336
      %p345 = scmp.eq.s32.totalorder %s31, 0
      %p346 = por %p344, %p345
      %p347 = scmp.ne.s32.totalorder %s335, %s336
      %p348 = scmp.eq.s32.totalorder %s32, 1
      %p349 = por %p347, %p348
      %p351 = scmp.ne.s32.totalorder %s336, %s350
      %p352 = scmp.eq.s32.totalorder %s32, 0
      %p353 = por %p351, %p352
      %s355 = sadd.s32 %s354, 1
      %p358 = scmp.eq.s32.totalorder %s26, 1
      %p359 = scmp.ne.s32.totalorder %s354, %s356
      %p360 = scmp.eq.s32.totalorder %s26, 0
      %p361 = por %p359, %p360
      %p362 = scmp.ne.s32.totalorder %s354, %s356
      %p363 = scmp.eq.s32.totalorder %s31, 1
      %p364 = por %p362, %p363
      %p365 = scmp.ne.s32.totalorder %s356, %s357
      %p366 = scmp.eq.s32.totalorder %s31, 0
      %p367 = por %p365, %p366
      %p368 = scmp.ne.s32.totalorder %s356, %s357
      %p369 = scmp.eq.s32.totalorder %s32, 1
      %p370 = por %p368, %p369
      %p372 = scmp.ne.s32.totalorder %s357, %s371
      %p373 = scmp.eq.s32.totalorder %s32, 0
      %p374 = por %p372, %p373
      %s376 = sadd.s32 %s375, 1
      %p379 = scmp.eq.s32.totalorder %s26, 1
      %p380 = scmp.ne.s32.totalorder %s375, %s377
      %p381 = scmp.eq.s32.totalorder %s26, 0
      %p382 = por %p380, %p381
      %p383 = scmp.ne.s32.totalorder %s375, %s377
      %p384 = scmp.eq.s32.totalorder %s31, 1
      %p385 = por %p383, %p384
      %p386 = scmp.ne.s32.totalorder %s377, %s378
      %p387 = scmp.eq.s32.totalorder %s31, 0
      %p388 = por %p386, %p387
      %p389 = scmp.ne.s32.totalorder %s377, %s378
      %p390 = scmp.eq.s32.totalorder %s32, 1
      %p391 = por %p389, %p390
      %p393 = scmp.ne.s32.totalorder %s378, %s392
      %p394 = scmp.eq.s32.totalorder %s32, 0
      %p395 = por %p393, %p394
      %s396 = ssub.s32 %s26, %s33
      %p397 = scmp.eq.s32.totalorder %s396, 0
      %s399 = sadd.s32 %s398, 1
      %s400 = scalar_select %p397, %s398, %s399
      %p403 = pneg %p397
      %p404 = scmp.eq.s32.totalorder %s26, 1
      %p405 = por %p403, %p404
      %p406 = scmp.ne.s32.totalorder %s398, %s401
      %p407 = scmp.eq.s32.totalorder %s26, 0
      %p408 = por %p406, %p407
      %p409 = scmp.ne.s32.totalorder %s398, %s401
      %p410 = scmp.eq.s32.totalorder %s31, 1
      %p411 = por %p409, %p410
      %p412 = scmp.ne.s32.totalorder %s401, %s402
      %p413 = scmp.eq.s32.totalorder %s31, 0
      %p414 = por %p412, %p413
      %p415 = scmp.ne.s32.totalorder %s401, %s402
      %p416 = scmp.eq.s32.totalorder %s32, 1
      %p417 = por %p415, %p416
      %p419 = scmp.ne.s32.totalorder %s402, %s418
      %p420 = scmp.eq.s32.totalorder %s32, 0
      %p421 = por %p419, %p420
      %p422 = scmp.le.s32.totalorder 1, %s26
      %p423 = scmp.lt.s32.totalorder %s26, 3
      %p424 = pnand %p422, %p423
      %p425 = pneg %p424
      // Predicated region
      $region9: #{tpu_custom_call.1} parent=5 // pred_check
        _
      $region10: #{tpu_custom_call.1} parent=5 // pred_check_branch
        %427 = sbr.rel (%p424) target = $region12
      $region11: #{tpu_custom_call.1} parent=5 // pred_region
        %s428 = ssub.s32 %s26, 1
        // Predicated region
        $region13: #{tpu_custom_call.1} parent=11 // pred_check
          %p429 = pneg %p73
        $region14: #{tpu_custom_call.1} parent=11 // pred_check_branch
          %431 = sbr.rel (%p429) target = $region16
        $region15: #{tpu_custom_call.1} parent=11 // pred_region
          _
        $region16: #{tpu_custom_call.1} parent=11 // pred_fallthru
          _
        // Predicated region
        $region17: #{tpu_custom_call.1} parent=11 // pred_check
          %p432 = pneg %p94
        $region18: #{tpu_custom_call.1} parent=11 // pred_check_branch
          %434 = sbr.rel (%p432) target = $region20
        $region19: #{tpu_custom_call.1} parent=11 // pred_region
          _
        $region20: #{tpu_custom_call.1} parent=11 // pred_fallthru
          _
        // Predicated region
        $region21: #{tpu_custom_call.1} parent=11 // pred_check
          %p435 = pneg %p115
        $region22: #{tpu_custom_call.1} parent=11 // pred_check_branch
          %437 = sbr.rel (%p435) target = $region24
        $region23: #{tpu_custom_call.1} parent=11 // pred_region
          _
        $region24: #{tpu_custom_call.1} parent=11 // pred_fallthru
          _
        // Predicated region
        $region25: #{tpu_custom_call.1} parent=11 // pred_check
          %p438 = pneg %p136
        $region26: #{tpu_custom_call.1} parent=11 // pred_check_branch
          %440 = sbr.rel (%p438) target = $region28
        $region27: #{tpu_custom_call.1} parent=11 // pred_region
          _
        $region28: #{tpu_custom_call.1} parent=11 // pred_fallthru
          _
        // Predicated region
        $region29: #{tpu_custom_call.1} parent=11 // pred_check
          %p441 = pneg %p157
        $region30: #{tpu_custom_call.1} parent=11 // pred_check_branch
          %443 = sbr.rel (%p441) target = $region32
        $region31: #{tpu_custom_call.1} parent=11 // pred_region
          _
        $region32: #{tpu_custom_call.1} parent=11 // pred_fallthru
          _
        // Predicated region
        $region33: #{tpu_custom_call.1} parent=11 // pred_check
          %p444 = pneg %p178
        $region34: #{tpu_custom_call.1} parent=11 // pred_check_branch
          %446 = sbr.rel (%p444) target = $region36
        $region35: #{tpu_custom_call.1} parent=11 // pred_region
          _
        $region36: #{tpu_custom_call.1} parent=11 // pred_fallthru
          _
        // Predicated region
        $region37: #{tpu_custom_call.1} parent=11 // pred_check
          %p447 = pneg %p199
        $region38: #{tpu_custom_call.1} parent=11 // pred_check_branch
          %449 = sbr.rel (%p447) target = $region40
        $region39: #{tpu_custom_call.1} parent=11 // pred_region
          _
        $region40: #{tpu_custom_call.1} parent=11 // pred_fallthru
          _
        // Predicated region
        $region41: #{tpu_custom_call.1} parent=11 // pred_check
          %p450 = pneg %p220
        $region42: #{tpu_custom_call.1} parent=11 // pred_check_branch
          %452 = sbr.rel (%p450) target = $region44
        $region43: #{tpu_custom_call.1} parent=11 // pred_region
          _
        $region44: #{tpu_custom_call.1} parent=11 // pred_fallthru
          _
        // Predicated region
        $region45: #{tpu_custom_call.1} parent=11 // pred_check
          %p453 = pneg %p241
        $region46: #{tpu_custom_call.1} parent=11 // pred_check_branch
          %455 = sbr.rel (%p453) target = $region48
        $region47: #{tpu_custom_call.1} parent=11 // pred_region
          _
        $region48: #{tpu_custom_call.1} parent=11 // pred_fallthru
          _
        // Predicated region
        $region49: #{tpu_custom_call.1} parent=11 // pred_check
          %p456 = pneg %p262
        $region50: #{tpu_custom_call.1} parent=11 // pred_check_branch
          %458 = sbr.rel (%p456) target = $region52
        $region51: #{tpu_custom_call.1} parent=11 // pred_region
          _
        $region52: #{tpu_custom_call.1} parent=11 // pred_fallthru
          _
        // Predicated region
        $region53: #{tpu_custom_call.1} parent=11 // pred_check
          %p459 = pneg %p283
        $region54: #{tpu_custom_call.1} parent=11 // pred_check_branch
          %461 = sbr.rel (%p459) target = $region56
        $region55: #{tpu_custom_call.1} parent=11 // pred_region
          _
        $region56: #{tpu_custom_call.1} parent=11 // pred_fallthru
          _
        // Predicated region
        $region57: #{tpu_custom_call.1} parent=11 // pred_check
          %p462 = pneg %p304
        $region58: #{tpu_custom_call.1} parent=11 // pred_check_branch
          %464 = sbr.rel (%p462) target = $region60
        $region59: #{tpu_custom_call.1} parent=11 // pred_region
          _
        $region60: #{tpu_custom_call.1} parent=11 // pred_fallthru
          _
        // Predicated region
        $region61: #{tpu_custom_call.1} parent=11 // pred_check
          %p465 = pneg %p325
        $region62: #{tpu_custom_call.1} parent=11 // pred_check_branch
          %467 = sbr.rel (%p465) target = $region64
        $region63: #{tpu_custom_call.1} parent=11 // pred_region
          _
        $region64: #{tpu_custom_call.1} parent=11 // pred_fallthru
          _
        // Predicated region
        $region65: #{tpu_custom_call.1} parent=11 // pred_check
          %p468 = pneg %p346
        $region66: #{tpu_custom_call.1} parent=11 // pred_check_branch
          %470 = sbr.rel (%p468) target = $region68
        $region67: #{tpu_custom_call.1} parent=11 // pred_region
          _
        $region68: #{tpu_custom_call.1} parent=11 // pred_fallthru
          _
        // Predicated region
        $region69: #{tpu_custom_call.1} parent=11 // pred_check
          %p471 = pneg %p367
        $region70: #{tpu_custom_call.1} parent=11 // pred_check_branch
          %473 = sbr.rel (%p471) target = $region72
        $region71: #{tpu_custom_call.1} parent=11 // pred_region
          _
        $region72: #{tpu_custom_call.1} parent=11 // pred_fallthru
          _
        // Predicated region
        $region73: #{tpu_custom_call.1} parent=11 // pred_check
          %p474 = pneg %p388
        $region74: #{tpu_custom_call.1} parent=11 // pred_check_branch
          %476 = sbr.rel (%p474) target = $region76
        $region75: #{tpu_custom_call.1} parent=11 // pred_region
          _
        $region76: #{tpu_custom_call.1} parent=11 // pred_fallthru
          _
      $region12: #{tpu_custom_call.1} parent=5 // pred_fallthru
        _
      %p477 = scmp.lt.s32.totalorder %s26, 2
      // Predicated region
      $region77: #{tpu_custom_call.1} parent=5 // pred_check
        %p478 = pneg %p477
      $region78: #{tpu_custom_call.1} parent=5 // pred_check_branch
        %480 = sbr.rel (%p478) target = $region80
      $region79: #{tpu_custom_call.1} parent=5 // pred_region
        // Predicated region
        $region81: #{tpu_custom_call.1} parent=79 // pred_check
          %p481 = pneg %p46
        $region82: #{tpu_custom_call.1} parent=79 // pred_check_branch
          %483 = sbr.rel (%p481) target = $region84
        $region83: #{tpu_custom_call.1} parent=79 // pred_region
          %p484 = scmp.lt.s32.totalorder %s26, 1
          %s485 = scalar_select %p484, %s26, 1
          %s486 = smul.addr %s485, 2
          %s487 = smul.addr %s486, 8
          %s488 = scalar_lea.vmem %s0, %s487
        $region84: #{tpu_custom_call.1} parent=79 // pred_fallthru
          _
      $region80: #{tpu_custom_call.1} parent=5 // pred_fallthru
        _
      %p489 = scmp.le.s32.totalorder 1, %s26
      %p490 = scmp.lt.s32.totalorder %s26, 3
      %p491 = pnand %p489, %p490
      %p492 = pneg %p491
      // Predicated region
      $region85: #{tpu_custom_call.1} parent=5 // pred_check
        _
      $region86: #{tpu_custom_call.1} parent=5 // pred_check_branch
        %494 = sbr.rel (%p491) target = $region88
      $region87: #{tpu_custom_call.1} parent=5 // pred_region
        %s495 = ssub.s32 %s26, 1
        %p496 = scmp.lt.s32.totalorder %s31, 1
        %s497 = scalar_select %p496, %s31, 1
        %s498 = smul.addr %s497, 2
        %s499 = smul.addr %s498, 8
        %s500 = scalar_lea.vmem %s0, %s499
        %p501 = pneg %p52
        %p502 = pneg %p49
        %p503 = pneg %p73
        %p504 = pneg %p70
        %p505 = pneg %p94
        %p506 = pneg %p91
        %p507 = pneg %p115
        %p508 = pneg %p112
        %p509 = pneg %p136
        %p510 = pneg %p133
        %p511 = pneg %p157
        %p512 = pneg %p154
        %p513 = pneg %p178
        %p514 = pneg %p175
        %p515 = pneg %p199
        %p516 = pneg %p196
        %p517 = pneg %p220
        %p518 = pneg %p217
        %p519 = pneg %p241
        %p520 = pneg %p238
        %p521 = pneg %p262
        %p522 = pneg %p259
        %p523 = pneg %p283
        %p524 = pneg %p280
        %p525 = pneg %p304
        %p526 = pneg %p301
        %p527 = pneg %p325
        %p528 = pneg %p322
        %p529 = pneg %p346
        %p530 = pneg %p343
        %p531 = pneg %p367
        %p532 = pneg %p364
        %p533 = pneg %p388
        %p534 = pneg %p385
        %p535 = pneg %p414
        %p536 = pneg %p411
        %s537 = sand.u32 %s401, 1
        %s538 = scalar_lea.sflag [#allocation3], %s537
        %s539 = sand.u32 %s401, 1
        %s540 = smul.addr %s539, 4
        %s541 = scalar_lea.vmem [#allocation2], %s540
        %p542 = scmp.lt.s32.totalorder %s31, 1
        %s543 = scalar_select %p542, %s31, 1
        %s544 = smul.addr %s543, 2
        %s545 = smul.addr %s544, 8
        %s546 = scalar_lea.vmem %s0, %s545
        %v548 = vld [vmem:[%s546] sm:$0xff]
        %v549 = vld [vmem:[%s546 + $0x8] sm:$0xff]
        %v550 = vld [vmem:[%s1] sm:$0xf]
        %v551 = vld [vmem:[%s1 + $0x4] sm:$0xf]
        %v552 = vld [vmem:[%s1 + $0x8] sm:$0xf]
        %v553 = vld [vmem:[%s2] sm:$0x1]
        %vm556 = vcmask 1040384
        %v557 = vrot.slane %v548, 7
        %v558 = vrot.slane %v549, 7
        %v559 = vsel %vm556, %v557, %v558
        %v563 = vsel %vm556, 0.0, %v557
        %v564 = vsel %vm556, %v558, 0.0
        %vm567 = vcmask 1046528
        %v568 = vrot.slane %v563, 1
        %v569 = vrot.slane %v559, 1
        %v570 = vsel %vm567, %v568, %v569
        %v571 = vrot.slane %v564, 1
        %v572 = vsel %vm567, %v569, %v571
        %573 = vrot.lane.b32.xlu0 %v570, 8
        %v574 = vpop.permute.xlu0 %573
        %575 = vrot.lane.b32.xlu0 %v572, 8
        %v576 = vpop.permute.xlu0 %575
        %vm579 = vcmask 1045504
        %v580 = vrot.slane %v563, 2
        %v581 = vrot.slane %v559, 2
        %v582 = vsel %vm579, %v580, %v581
        %v583 = vrot.slane %v564, 2
        %v584 = vsel %vm579, %v581, %v583
        %585 = vrot.lane.b32.xlu0 %v582, 16
        %v586 = vpop.permute.xlu0 %585
        %587 = vrot.lane.b32.xlu0 %v584, 16
        %v588 = vpop.permute.xlu0 %587
        %vm591 = vcmask 64512
        %v592 = vsel %vm591, %v563, %v574
        %v593 = vsel %vm591, %v559, %v576
        %vm594 = vcmask 130048
        %v595 = vsel %vm594, %v592, %v586
        %v596 = vsel %vm594, %v593, %v588
        %v597 = vpack.c.bf16 %v596, %v595
        %v599 = vperm.slane %v553, 0
        %v604 = vunpack.c.l.b16 %v550
        %v605 = vunpack.c.l.b16 %v551
        %v606 = vunpack.c.l.b16 %v552
        %v607 = vpack.c.b16 %v605, %v604
        %v608 = vpack.c.b16 %v606, %v606
        %vm610 = vcmask 195584
        %v612 = vsel %vm610, %v597, 0
        %vm614 = vcmask 1043456
        %v616 = vsel %vm614, %v608, 0
        %618 = vmatpush.bf16.msra.mxu0 0
        %619 = vmatpush.bf16.msra.mxu0 0
        %620 = vmatpush.bf16.msra.mxu0 0
        %621 = vmatpush.bf16.msra.mxu0 0
        %622 = vmatpush.bf16.msra.mxu0 0
        %623 = vmatpush.bf16.msra.mxu0 0
        %624 = vmatpush.bf16.msra.mxu0 %v616
        %625 = vmatpush.bf16.msra.mxu0 %v607
        %626 = vmatmul.bf16.gmra.mxu0 %v612
        %v627 = vpop.f32.mrf.mxu0
        %v628 = vadd.f32 %v599, %v627
        %v629 = vpop.f32.mrf.mxu0
        %v630 = vadd.f32 %v599, %v629
        %631 = vdwg.mxu0
        %v632 = vpack.c.bf16 %v628, %v628
        %v633 = vpack.c.bf16 %v630, %v630
        %v634 = vunpack.c.l.bf16 %v632
        %v635 = vunpack.c.l.bf16 %v633
        %v636 = vmax.f32 %v634, 0.0
        %v637 = vmax.f32 %v635, 0.0
        %v638 = vpack.c.bf16 %v636, %v636
        %v639 = vpack.c.bf16 %v637, %v637
        %v640 = vld [vmem:[%s3] sm:$0xf]
        %v641 = vld [vmem:[%s3 + $0x4] sm:$0xf]
        %v642 = vld [vmem:[%s3 + $0x8] sm:$0xf]
        %v643 = vld [vmem:[%s3 + $0xc] sm:$0xf]
        %v644 = vld [vmem:[%s3 + $0x10] sm:$0xf]
        %v645 = vld [vmem:[%s3 + $0x14] sm:$0xf]
        %v646 = vld [vmem:[%s3 + $0x18] sm:$0xf]
        %v647 = vld [vmem:[%s3 + $0x1c] sm:$0xf]
        %v648 = vld [vmem:[%s3 + $0x20] sm:$0xf]
        %v649 = vld [vmem:[%s3 + $0x24] sm:$0xf]
        %v650 = vld [vmem:[%s3 + $0x28] sm:$0xf]
        %v651 = vld [vmem:[%s3 + $0x2c] sm:$0xf]
        %v652 = vld [vmem:[%s3 + $0x30] sm:$0xf]
        %v653 = vld [vmem:[%s3 + $0x34] sm:$0xf]
        %v654 = vld [vmem:[%s3 + $0x38] sm:$0xf]
        %v655 = vld [vmem:[%s3 + $0x3c] sm:$0xf]
        %v656 = vld [vmem:[%s4] sm:$0x1]
        %v659 = vunpack.c.l.b16 %v638
        %v660 = vunpack.c.l.b16 %v639
        %v661 = vpack.c.b16 %v660, %v659
        %v663 = vshrl.u32 %v661, 16
        %v665 = vrot.slane %v663, 7
        %v666 = vshll.u32 %v661, 16
        %v668 = vor.u32 %v665, %v666
        %vm671 = vcmask 1040384
        %vm672 = vsmask.f32 256
        %vm673 = vmand %vm671, %vm672
        %v674 = vsel %vm673, 0, %v668
        %v675 = vsel %vm673, %v665, 0
        %v677 = vrot.slane %v674, 1
        %v678 = vrot.slane %v674, 2
        %v679 = vrot.slane %v674, 3
        %v680 = vrot.slane %v674, 4
        %v681 = vrot.slane %v674, 5
        %v682 = vrot.slane %v674, 6
        %v683 = vrot.slane %v674, 7
        %685 = vst [vmem:[#allocation1] ss:$9 sm:$0xff] %v674
        %v686 = vld [vmem:[#allocation1] sm:$0xff]
        %689 = vst [vmem:[#allocation1] ss:$9 sm:$0xff] %v677
        %v690 = vld [vmem:[#allocation1] sm:$0xff]
        %693 = vst [vmem:[#allocation1] ss:$9 sm:$0xff] %v678
        %v694 = vld [vmem:[#allocation1] sm:$0xff]
        %697 = vst [vmem:[#allocation1] ss:$9 sm:$0xff] %v679
        %v698 = vld [vmem:[#allocation1] sm:$0xff]
        %701 = vst [vmem:[#allocation1] ss:$9 sm:$0xff] %v680
        %v702 = vld [vmem:[#allocation1] sm:$0xff]
        %705 = vst [vmem:[#allocation1] ss:$9 sm:$0xff] %v681
        %v706 = vld [vmem:[#allocation1] sm:$0xff]
        %709 = vst [vmem:[#allocation1] ss:$9 sm:$0xff] %v682
        %v710 = vld [vmem:[#allocation1] sm:$0xff]
        %713 = vst [vmem:[#allocation1] ss:$9 sm:$0xff] %v683
        %v714 = vld [vmem:[#allocation1] sm:$0xff]
        %v716 = vunpack.c.l.b16 %v686
        %v717 = vunpack.c.l.b16 %v690
        %v718 = vunpack.c.l.b16 %v694
        %v719 = vunpack.c.l.b16 %v698
        %v720 = vunpack.c.l.b16 %v702
        %v721 = vunpack.c.l.b16 %v706
        %v722 = vunpack.c.l.b16 %v710
        %v723 = vunpack.c.l.b16 %v714
        %v724 = vrot.slane %v717, 7
        %vm725 = vcmask 1041409
        %v726 = vsel %vm725, %v724, %v716
        %v727 = vrot.slane %v718, 6
        %vm728 = vcmask 1042434
        %v729 = vsel %vm728, %v727, %v726
        %v730 = vrot.slane %v719, 5
        %vm731 = vcmask 1043459
        %v732 = vsel %vm731, %v730, %v729
        %v733 = vrot.slane %v720, 4
        %vm734 = vcmask 1044484
        %v735 = vsel %vm734, %v733, %v732
        %v736 = vrot.slane %v721, 3
        %vm737 = vcmask 1045509
        %v738 = vsel %vm737, %v736, %v735
        %v739 = vrot.slane %v722, 2
        %vm740 = vcmask 1046534
        %v741 = vsel %vm740, %v739, %v738
        %v742 = vrot.slane %v723, 1
        %vm743 = vcmask 1047559
        %v744 = vsel %vm743, %v742, %v741
        %v745 = vpack.c.b16 %v744, %v744
        %746 = vst [vmem:[#allocation1] ss:$9 sm:$0xff] %v674
        %v747 = vld [vmem:[#allocation1] sm:$0xff]
        %749 = vst [vmem:[#allocation1] ss:$9 sm:$0xff] %v677
        %v750 = vld [vmem:[#allocation1] sm:$0xff]
        %752 = vst [vmem:[#allocation1] ss:$9 sm:$0xff] %v678
        %v753 = vld [vmem:[#allocation1] sm:$0xff]
        %755 = vst [vmem:[#allocation1] ss:$9 sm:$0xff] %v679
        %v756 = vld [vmem:[#allocation1] sm:$0xff]
        %758 = vst [vmem:[#allocation1] ss:$9 sm:$0xff] %v680
        %v759 = vld [vmem:[#allocation1] sm:$0xff]
        %761 = vst [vmem:[#allocation1] ss:$9 sm:$0xff] %v681
        %v762 = vld [vmem:[#allocation1] sm:$0xff]
        %764 = vst [vmem:[#allocation1] ss:$9 sm:$0xff] %v682
        %v765 = vld [vmem:[#allocation1] sm:$0xff]
        %767 = vst [vmem:[#allocation1] ss:$9 sm:$0xff] %v683
        %v768 = vld [vmem:[#allocation1] sm:$0xff]
        %v770 = vunpack.c.l.b16 %v747
        %v771 = vunpack.c.l.b16 %v750
        %v772 = vunpack.c.l.b16 %v753
        %v773 = vunpack.c.l.b16 %v756
        %v774 = vunpack.c.l.b16 %v759
        %v775 = vunpack.c.l.b16 %v762
        %v776 = vunpack.c.l.b16 %v765
        %v777 = vunpack.c.l.b16 %v768
        %v778 = vrot.slane %v770, 1
        %v779 = vsel %vm725, %v771, %v778
        %v780 = vrot.slane %v772, 7
        %v781 = vsel %vm728, %v780, %v779
        %v782 = vrot.slane %v773, 6
        %v783 = vsel %vm731, %v782, %v781
        %v784 = vrot.slane %v774, 5
        %v785 = vsel %vm734, %v784, %v783
        %v786 = vrot.slane %v775, 4
        %v787 = vsel %vm737, %v786, %v785
        %v788 = vrot.slane %v776, 3
        %v789 = vsel %vm740, %v788, %v787
        %v790 = vrot.slane %v777, 2
        %v791 = vsel %vm743, %v790, %v789
        %v792 = vpack.c.b16 %v791, %v791
        %793 = vrot.lane.b32.xlu0 %v792, 32
        %v794 = vpop.permute.xlu0 %793
        %795 = vst [vmem:[#allocation1] ss:$9 sm:$0xff] %v677
        %v796 = vld [vmem:[#allocation1] sm:$0xff]
        %798 = vst [vmem:[#allocation1] ss:$9 sm:$0xff] %v678
        %v799 = vld [vmem:[#allocation1] sm:$0xff]
        %801 = vst [vmem:[#allocation1] ss:$9 sm:$0xff] %v679
        %v802 = vld [vmem:[#allocation1] sm:$0xff]
        %804 = vst [vmem:[#allocation1] ss:$9 sm:$0xff] %v680
        %v805 = vld [vmem:[#allocation1] sm:$0xff]
        %807 = vst [vmem:[#allocation1] ss:$9 sm:$0xff] %v681
        %v808 = vld [vmem:[#allocation1] sm:$0xff]
        %810 = vst [vmem:[#allocation1] ss:$9 sm:$0xff] %v682
        %v811 = vld [vmem:[#allocation1] sm:$0xff]
        %813 = vst [vmem:[#allocation1] ss:$9 sm:$0xff] %v683
        %v814 = vld [vmem:[#allocation1] sm:$0xff]
        %817 = vst [vmem:[#allocation1] ss:$9 sm:$0xff] %v675
        %v818 = vld [vmem:[#allocation1] sm:$0xff]
        %v820 = vunpack.c.l.b16 %v796
        %v821 = vunpack.c.l.b16 %v799
        %v822 = vunpack.c.l.b16 %v802
        %v823 = vunpack.c.l.b16 %v805
        %v824 = vunpack.c.l.b16 %v808
        %v825 = vunpack.c.l.b16 %v811
        %v826 = vunpack.c.l.b16 %v814
        %v827 = vunpack.c.l.b16 %v818
        %v828 = vrot.slane %v821, 7
        %v829 = vsel %vm725, %v828, %v820
        %v830 = vrot.slane %v822, 6
        %v831 = vsel %vm728, %v830, %v829
        %v832 = vrot.slane %v823, 5
        %v833 = vsel %vm731, %v832, %v831
        %v834 = vrot.slane %v824, 4
        %v835 = vsel %vm734, %v834, %v833
        %v836 = vrot.slane %v825, 3
        %v837 = vsel %vm737, %v836, %v835
        %v838 = vrot.slane %v826, 2
        %v839 = vsel %vm740, %v838, %v837
        %v840 = vrot.slane %v827, 1
        %v841 = vsel %vm743, %v840, %v839
        %v842 = vpack.c.b16 %v841, %v841
        %843 = vrot.lane.b32.xlu0 %v842, 64
        %v844 = vpop.permute.xlu0 %843
        %845 = vst [vmem:[#allocation1] ss:$9 sm:$0xff] %v677
        %v846 = vld [vmem:[#allocation1] sm:$0xff]
        %848 = vst [vmem:[#allocation1] ss:$9 sm:$0xff] %v678
        %v849 = vld [vmem:[#allocation1] sm:$0xff]
        %851 = vst [vmem:[#allocation1] ss:$9 sm:$0xff] %v679
        %v852 = vld [vmem:[#allocation1] sm:$0xff]
        %854 = vst [vmem:[#allocation1] ss:$9 sm:$0xff] %v680
        %v855 = vld [vmem:[#allocation1] sm:$0xff]
        %857 = vst [vmem:[#allocation1] ss:$9 sm:$0xff] %v681
        %v858 = vld [vmem:[#allocation1] sm:$0xff]
        %860 = vst [vmem:[#allocation1] ss:$9 sm:$0xff] %v682
        %v861 = vld [vmem:[#allocation1] sm:$0xff]
        %863 = vst [vmem:[#allocation1] ss:$9 sm:$0xff] %v683
        %v864 = vld [vmem:[#allocation1] sm:$0xff]
        %866 = vst [vmem:[#allocation1] ss:$9 sm:$0xff] %v675
        %v867 = vld [vmem:[#allocation1] sm:$0xff]
        %v869 = vunpack.c.l.b16 %v846
        %v870 = vunpack.c.l.b16 %v849
        %v871 = vunpack.c.l.b16 %v852
        %v872 = vunpack.c.l.b16 %v855
        %v873 = vunpack.c.l.b16 %v858
        %v874 = vunpack.c.l.b16 %v861
        %v875 = vunpack.c.l.b16 %v864
        %v876 = vunpack.c.l.b16 %v867
        %v877 = vrot.slane %v869, 1
        %v878 = vsel %vm725, %v870, %v877
        %v879 = vrot.slane %v871, 7
        %v880 = vsel %vm728, %v879, %v878
        %v881 = vrot.slane %v872, 6
        %v882 = vsel %vm731, %v881, %v880
        %v883 = vrot.slane %v873, 5
        %v884 = vsel %vm734, %v883, %v882
        %v885 = vrot.slane %v874, 4
        %v886 = vsel %vm737, %v885, %v884
        %v887 = vrot.slane %v875, 3
        %v888 = vsel %vm740, %v887, %v886
        %v889 = vrot.slane %v876, 2
        %v890 = vsel %vm743, %v889, %v888
        %v891 = vpack.c.b16 %v890, %v890
        %892 = vrot.lane.b32.xlu0 %v891, 96
        %v893 = vpop.permute.xlu0 %892
        %vm894 = vcmask 261120
        %v897 = vsel %vm894, %v745, %v794
        %vm898 = vcmask 523264
        %v900 = vsel %vm898, %v897, %v844
        %vm901 = vcmask 785408
        %v903 = vsel %vm901, %v900, %v893
        %v906 = vperm.slane %v656, 0
        %v924 = vunpack.c.l.b16 %v640
        %v925 = vunpack.c.l.b16 %v641
        %v926 = vunpack.c.l.b16 %v642
        %v927 = vunpack.c.l.b16 %v643
        %v928 = vunpack.c.l.b16 %v644
        %v929 = vunpack.c.l.b16 %v645
        %v930 = vunpack.c.l.b16 %v646
        %v931 = vunpack.c.l.b16 %v647
        %v932 = vunpack.c.l.b16 %v648
        %v933 = vunpack.c.l.b16 %v649
        %v934 = vunpack.c.l.b16 %v650
        %v935 = vunpack.c.l.b16 %v651
        %v936 = vunpack.c.l.b16 %v652
        %v937 = vunpack.c.l.b16 %v653
        %v938 = vunpack.c.l.b16 %v654
        %v939 = vunpack.c.l.b16 %v655
        %v940 = vpack.c.b16 %v925, %v924
        %v941 = vpack.c.b16 %v927, %v926
        %v942 = vpack.c.b16 %v929, %v928
        %v943 = vpack.c.b16 %v931, %v930
        %v944 = vpack.c.b16 %v933, %v932
        %v945 = vpack.c.b16 %v935, %v934
        %v946 = vpack.c.b16 %v937, %v936
        %v947 = vpack.c.b16 %v939, %v938
        %956 = vmatpush.bf16.msra.mxu0 %v947
        %957 = vmatpush.bf16.msra.mxu0 %v946
        %958 = vmatpush.bf16.msra.mxu0 %v945
        %959 = vmatpush.bf16.msra.mxu0 %v944
        %960 = vmatpush.bf16.msra.mxu0 %v943
        %961 = vmatpush.bf16.msra.mxu0 %v942
        %962 = vmatpush.bf16.msra.mxu0 %v941
        %963 = vmatpush.bf16.msra.mxu0 %v940
        %964 = vmatmul.bf16.gmra.mxu0 %v903
        %v965 = vpop.f32.mrf.mxu0
        %v966 = vadd.f32 %v906, %v965
        %v967 = vpop.f32.mrf.mxu0
        %968 = vdwg.mxu0
        %v969 = vld [vmem:[%s5] sm:$0xf]
        %v970 = vld [vmem:[%s5 + $0x4] sm:$0xf]
        %v971 = vld [vmem:[%s5 + $0x8] sm:$0xf]
        %v972 = vld [vmem:[%s5 + $0xc] sm:$0xf]
        %v973 = vld [vmem:[%s5 + $0x10] sm:$0xf]
        %v974 = vld [vmem:[%s5 + $0x14] sm:$0xf]
        %v975 = vld [vmem:[%s5 + $0x18] sm:$0xf]
        %v976 = vld [vmem:[%s5 + $0x1c] sm:$0xf]
        %v977 = vld [vmem:[%s5 + $0x20] sm:$0xf]
        %v978 = vld [vmem:[%s5 + $0x24] sm:$0xf]
        %v979 = vld [vmem:[%s5 + $0x28] sm:$0xf]
        %v980 = vld [vmem:[%s5 + $0x2c] sm:$0xf]
        %v981 = vld [vmem:[%s6] sm:$0x1]
        %v982 = vld [vmem:[%s7] sm:$0xf]
        %v983 = vld [vmem:[%s7 + $0x4] sm:$0xf]
        %v984 = vld [vmem:[%s7 + $0x8] sm:$0xf]
        %v985 = vld [vmem:[%s7 + $0xc] sm:$0xf]
        %v986 = vld [vmem:[%s8] sm:$0x1]
        %v987 = vpack.c.bf16 %v966, %v966
        %v988 = vunpack.c.l.bf16 %v987
        %v989 = vmax.f32 %v988, 0.0
        %v990 = vpack.c.bf16 %v989, %v989
        %v992 = vunpack.c.l.b16 %v990
        %v993 = vpack.c.b16 %v992, %v992
        %v995 = vshrl.u32 %v993, 16
        %v997 = vrot.slane %v995, 3
        %v998 = vshll.u32 %v993, 16
        %v1000 = vrot.slane %v998, 4
        %v1001 = vor.u32 %v997, %v1000
        %vm1004 = vcmask 1044480
        %vm1005 = vsmask.f32 4352
        %vm1006 = vmand %vm1004, %vm1005
        %v1007 = vsel %vm1006, 0, %v1001
        %v1008 = vsel %vm673, %v997, 0
        %vm1009 = vsmask.f32 3328
        %v1011 = vshrl.u32 %v1007, 16
        %v1013 = vrot.slane %v1011, 4
        %v1014 = vshll.u32 %v1007, 16
        %v1016 = vrot.slane %v1014, 5
        %v1017 = vor.u32 %v1013, %v1016
        %v1019 = vshll.u32 %v1008, 16
        %v1021 = vrot.slane %v1019, 5
        %v1022 = vsel %vm1009, %v1017, %v1021
        %1023 = vrot.lane.b32.xlu0 %v1022, 32
        %v1024 = vpop.permute.xlu0 %1023
        %v1026 = vrot.slane %v1008, 1
        %1027 = vrot.lane.b32.xlu0 %v1026, 64
        %v1028 = vpop.permute.xlu0 %1027
        %v1030 = vsel %vm894, %v1007, %v1024
        %v1032 = vsel %vm898, %v1030, %v1028
        %v1034 = vperm.slane %v981, 0
        %v1048 = vunpack.c.l.b16 %v969
        %v1049 = vunpack.c.l.b16 %v970
        %v1050 = vunpack.c.l.b16 %v971
        %v1051 = vunpack.c.l.b16 %v972
        %v1052 = vunpack.c.l.b16 %v973
        %v1053 = vunpack.c.l.b16 %v974
        %v1054 = vunpack.c.l.b16 %v975
        %v1055 = vunpack.c.l.b16 %v976
        %v1056 = vunpack.c.l.b16 %v977
        %v1057 = vunpack.c.l.b16 %v978
        %v1058 = vunpack.c.l.b16 %v979
        %v1059 = vunpack.c.l.b16 %v980
        %v1060 = vpack.c.b16 %v1049, %v1048
        %v1061 = vpack.c.b16 %v1051, %v1050
        %v1062 = vpack.c.b16 %v1053, %v1052
        %v1063 = vpack.c.b16 %v1055, %v1054
        %v1064 = vpack.c.b16 %v1057, %v1056
        %v1065 = vpack.c.b16 %v1059, %v1058
        %v1072 = vsel %vm901, %v1032, 0
        %1074 = vmatpush.bf16.msra.mxu0 0
        %1075 = vmatpush.bf16.msra.mxu0 0
        %1076 = vmatpush.bf16.msra.mxu0 %v1065
        %1077 = vmatpush.bf16.msra.mxu0 %v1064
        %1078 = vmatpush.bf16.msra.mxu0 %v1063
        %1079 = vmatpush.bf16.msra.mxu0 %v1062
        %1080 = vmatpush.bf16.msra.mxu0 %v1061
        %1081 = vmatpush.bf16.msra.mxu0 %v1060
        %1082 = vmatmul.bf16.gmra.mxu0 %v1072
        %v1083 = vpop.f32.mrf.mxu0
        %v1084 = vadd.f32 %v1034, %v1083
        %v1085 = vpop.f32.mrf.mxu0
        %1086 = vdwg.mxu0
        %v1087 = vpack.c.bf16 %v1084, %v1084
        %v1088 = vunpack.c.l.bf16 %v1087
        %v1089 = vmax.f32 %v1088, 0.0
        %v1090 = vpack.c.bf16 %v1089, %v1089
        %v1092 = vperm.slane %v986, 0
        %v1098 = vunpack.c.l.b16 %v982
        %v1099 = vunpack.c.l.b16 %v983
        %v1100 = vunpack.c.l.b16 %v984
        %v1101 = vunpack.c.l.b16 %v985
        %v1102 = vpack.c.b16 %v1099, %v1098
        %v1103 = vpack.c.b16 %v1101, %v1100
        %v1107 = vsel %vm894, %v1090, 0
        %1109 = vmatpush.bf16.msra.mxu0 0
        %1110 = vmatpush.bf16.msra.mxu0 0
        %1111 = vmatpush.bf16.msra.mxu0 0
        %1112 = vmatpush.bf16.msra.mxu0 0
        %1113 = vmatpush.bf16.msra.mxu0 0
        %1114 = vmatpush.bf16.msra.mxu0 0
        %1115 = vmatpush.bf16.msra.mxu0 %v1103
        %1116 = vmatpush.bf16.msra.mxu0 %v1102
        %1117 = vmatmul.bf16.gmra.mxu0 %v1107
        %v1118 = vpop.f32.mrf.mxu0
        %v1119 = vadd.f32 %v1092, %v1118
        %v1120 = vpop.f32.mrf.mxu0
        %1121 = vdwg.mxu0
        %v1122 = vadd.f32 %v1119, %v966
        %v1123 = vld [vmem:[%s9] sm:$0xf]
        %v1124 = vld [vmem:[%s9 + $0x4] sm:$0xf]
        %v1125 = vld [vmem:[%s9 + $0x8] sm:$0xf]
        %v1126 = vld [vmem:[%s9 + $0xc] sm:$0xf]
        %v1127 = vld [vmem:[%s9 + $0x10] sm:$0xf]
        %v1128 = vld [vmem:[%s9 + $0x14] sm:$0xf]
        %v1129 = vld [vmem:[%s9 + $0x18] sm:$0xf]
        %v1130 = vld [vmem:[%s9 + $0x1c] sm:$0xf]
        %v1131 = vld [vmem:[%s9 + $0x20] sm:$0xf]
        %v1132 = vld [vmem:[%s9 + $0x24] sm:$0xf]
        %v1133 = vld [vmem:[%s9 + $0x28] sm:$0xf]
        %v1134 = vld [vmem:[%s9 + $0x2c] sm:$0xf]
        %v1135 = vld [vmem:[%s10] sm:$0x1]
        %v1136 = vld [vmem:[%s11] sm:$0xf]
        %v1137 = vld [vmem:[%s11 + $0x4] sm:$0xf]
        %v1138 = vld [vmem:[%s11 + $0x8] sm:$0xf]
        %v1139 = vld [vmem:[%s11 + $0xc] sm:$0xf]
        %v1140 = vld [vmem:[%s12] sm:$0x1]
        %v1141 = vpack.c.bf16 %v1122, %v1122
        %v1142 = vunpack.c.l.bf16 %v1141
        %v1143 = vmax.f32 %v1142, 0.0
        %v1144 = vpack.c.bf16 %v1143, %v1143
        %v1146 = vunpack.c.l.b16 %v1144
        %v1147 = vpack.c.b16 %v1146, %v1146
        %v1149 = vshrl.u32 %v1147, 16
        %v1151 = vrot.slane %v1149, 6
        %v1152 = vshll.u32 %v1147, 16
        %v1154 = vrot.slane %v1152, 7
        %v1155 = vor.u32 %v1151, %v1154
        %vm1157 = vcmask 1041408
        %vm1158 = vsmask.f32 1280
        %vm1159 = vmand %vm1157, %vm1158
        %v1160 = vsel %vm1159, 0, %v1155
        %vm1161 = vcmask 1045504
        %vm1162 = vsmask.f32 5376
        %vm1163 = vmand %vm1161, %vm1162
        %v1164 = vsel %vm1163, %v1160, 0
        %v1166 = vshrl.u32 %v1164, 16
        %v1168 = vrot.slane %v1166, 1
        %v1169 = vshll.u32 %v1164, 16
        %v1171 = vrot.slane %v1169, 2
        %v1172 = vor.u32 %v1168, %v1171
        %1173 = vrot.lane.b32.xlu0 %v1172, 32
        %v1174 = vpop.permute.xlu0 %1173
        %v1176 = vrot.slane %v1164, 3
        %1177 = vrot.lane.b32.xlu0 %v1176, 64
        %v1178 = vpop.permute.xlu0 %1177
        %v1180 = vsel %vm894, %v1164, %v1174
        %v1182 = vsel %vm898, %v1180, %v1178
        %v1184 = vperm.slane %v1135, 0
        %v1198 = vunpack.c.l.b16 %v1123
        %v1199 = vunpack.c.l.b16 %v1124
        %v1200 = vunpack.c.l.b16 %v1125
        %v1201 = vunpack.c.l.b16 %v1126
        %v1202 = vunpack.c.l.b16 %v1127
        %v1203 = vunpack.c.l.b16 %v1128
        %v1204 = vunpack.c.l.b16 %v1129
        %v1205 = vunpack.c.l.b16 %v1130
        %v1206 = vunpack.c.l.b16 %v1131
        %v1207 = vunpack.c.l.b16 %v1132
        %v1208 = vunpack.c.l.b16 %v1133
        %v1209 = vunpack.c.l.b16 %v1134
        %v1210 = vpack.c.b16 %v1199, %v1198
        %v1211 = vpack.c.b16 %v1201, %v1200
        %v1212 = vpack.c.b16 %v1203, %v1202
        %v1213 = vpack.c.b16 %v1205, %v1204
        %v1214 = vpack.c.b16 %v1207, %v1206
        %v1215 = vpack.c.b16 %v1209, %v1208
        %v1222 = vsel %vm901, %v1182, 0
        %1224 = vmatpush.bf16.msra.mxu0 0
        %1225 = vmatpush.bf16.msra.mxu0 0
        %1226 = vmatpush.bf16.msra.mxu0 %v1215
        %1227 = vmatpush.bf16.msra.mxu0 %v1214
        %1228 = vmatpush.bf16.msra.mxu0 %v1213
        %1229 = vmatpush.bf16.msra.mxu0 %v1212
        %1230 = vmatpush.bf16.msra.mxu0 %v1211
        %1231 = vmatpush.bf16.msra.mxu0 %v1210
        %1232 = vmatmul.bf16.gmra.mxu0 %v1222
        %v1233 = vpop.f32.mrf.mxu0
        %v1234 = vadd.f32 %v1184, %v1233
        %v1235 = vpop.f32.mrf.mxu0
        %1236 = vdwg.mxu0
        %v1237 = vpack.c.bf16 %v1234, %v1234
        %v1238 = vunpack.c.l.bf16 %v1237
        %v1239 = vmax.f32 %v1238, 0.0
        %v1240 = vpack.c.bf16 %v1239, %v1239
        %v1242 = vperm.slane %v1140, 0
        %v1248 = vunpack.c.l.b16 %v1136
        %v1249 = vunpack.c.l.b16 %v1137
        %v1250 = vunpack.c.l.b16 %v1138
        %v1251 = vunpack.c.l.b16 %v1139
        %v1252 = vpack.c.b16 %v1249, %v1248
        %v1253 = vpack.c.b16 %v1251, %v1250
        %v1257 = vsel %vm894, %v1240, 0
        %1259 = vmatpush.bf16.msra.mxu0 0
        %1260 = vmatpush.bf16.msra.mxu0 0
        %1261 = vmatpush.bf16.msra.mxu0 0
        %1262 = vmatpush.bf16.msra.mxu0 0
        %1263 = vmatpush.bf16.msra.mxu0 0
        %1264 = vmatpush.bf16.msra.mxu0 0
        %1265 = vmatpush.bf16.msra.mxu0 %v1253
        %1266 = vmatpush.bf16.msra.mxu0 %v1252
        %1267 = vmatmul.bf16.gmra.mxu0 %v1257
        %v1268 = vpop.f32.mrf.mxu0
        %v1269 = vadd.f32 %v1242, %v1268
        %v1270 = vpop.f32.mrf.mxu0
        %1271 = vdwg.mxu0
        %v1272 = vadd.f32 %v1269, %v1122
        %v1273 = vld [vmem:[%s13] sm:$0xf]
        %v1274 = vld [vmem:[%s13 + $0x4] sm:$0xf]
        %v1275 = vld [vmem:[%s13 + $0x8] sm:$0xf]
        %v1276 = vld [vmem:[%s13 + $0xc] sm:$0xf]
        %v1277 = vld [vmem:[%s13 + $0x10] sm:$0xf]
        %v1278 = vld [vmem:[%s13 + $0x14] sm:$0xf]
        %v1279 = vld [vmem:[%s13 + $0x18] sm:$0xf]
        %v1280 = vld [vmem:[%s13 + $0x1c] sm:$0xf]
        %v1281 = vld [vmem:[%s13 + $0x20] sm:$0xf]
        %v1282 = vld [vmem:[%s13 + $0x24] sm:$0xf]
        %v1283 = vld [vmem:[%s13 + $0x28] sm:$0xf]
        %v1284 = vld [vmem:[%s13 + $0x2c] sm:$0xf]
        %v1285 = vld [vmem:[%s14] sm:$0x1]
        %v1286 = vld [vmem:[%s15] sm:$0xf]
        %v1287 = vld [vmem:[%s15 + $0x4] sm:$0xf]
        %v1288 = vld [vmem:[%s15 + $0x8] sm:$0xf]
        %v1289 = vld [vmem:[%s15 + $0xc] sm:$0xf]
        %v1290 = vld [vmem:[%s16] sm:$0x1]
        %v1291 = vpack.c.bf16 %v1272, %v1272
        %v1292 = vunpack.c.l.bf16 %v1291
        %v1293 = vmax.f32 %v1292, 0.0
        %v1294 = vpack.c.bf16 %v1293, %v1293
        %v1296 = vunpack.c.l.b16 %v1294
        %v1297 = vpack.c.b16 %v1296, %v1296
        %v1299 = vshrl.u32 %v1297, 16
        %v1301 = vrot.slane %v1299, 7
        %v1302 = vshll.u32 %v1297, 16
        %v1304 = vor.u32 %v1301, %v1302
        %v1306 = vsel %vm673, 0, %v1304
        %v1307 = vsel %vm1006, %v1306, 0
        %v1309 = vshrl.u32 %v1307, 16
        %v1311 = vshll.u32 %v1307, 16
        %v1313 = vrot.slane %v1311, 1
        %v1314 = vor.u32 %v1309, %v1313
        %1315 = vrot.lane.b32.xlu0 %v1314, 32
        %v1316 = vpop.permute.xlu0 %1315
        %v1318 = vrot.slane %v1307, 1
        %1319 = vrot.lane.b32.xlu0 %v1318, 64
        %v1320 = vpop.permute.xlu0 %1319
        %v1322 = vsel %vm894, %v1307, %v1316
        %v1324 = vsel %vm898, %v1322, %v1320
        %v1326 = vperm.slane %v1285, 0
        %v1340 = vunpack.c.l.b16 %v1273
        %v1341 = vunpack.c.l.b16 %v1274
        %v1342 = vunpack.c.l.b16 %v1275
        %v1343 = vunpack.c.l.b16 %v1276
        %v1344 = vunpack.c.l.b16 %v1277
        %v1345 = vunpack.c.l.b16 %v1278
        %v1346 = vunpack.c.l.b16 %v1279
        %v1347 = vunpack.c.l.b16 %v1280
        %v1348 = vunpack.c.l.b16 %v1281
        %v1349 = vunpack.c.l.b16 %v1282
        %v1350 = vunpack.c.l.b16 %v1283
        %v1351 = vunpack.c.l.b16 %v1284
        %v1352 = vpack.c.b16 %v1341, %v1340
        %v1353 = vpack.c.b16 %v1343, %v1342
        %v1354 = vpack.c.b16 %v1345, %v1344
        %v1355 = vpack.c.b16 %v1347, %v1346
        %v1356 = vpack.c.b16 %v1349, %v1348
        %v1357 = vpack.c.b16 %v1351, %v1350
        %v1364 = vsel %vm901, %v1324, 0
        %1366 = vmatpush.bf16.msra.mxu0 0
        %1367 = vmatpush.bf16.msra.mxu0 0
        %1368 = vmatpush.bf16.msra.mxu0 %v1357
        %1369 = vmatpush.bf16.msra.mxu0 %v1356
        %1370 = vmatpush.bf16.msra.mxu0 %v1355
        %1371 = vmatpush.bf16.msra.mxu0 %v1354
        %1372 = vmatpush.bf16.msra.mxu0 %v1353
        %1373 = vmatpush.bf16.msra.mxu0 %v1352
        %1374 = vmatmul.bf16.gmra.mxu0 %v1364
        %v1375 = vpop.f32.mrf.mxu0
        %v1376 = vadd.f32 %v1326, %v1375
        %v1377 = vpop.f32.mrf.mxu0
        %1378 = vdwg.mxu0
        %v1379 = vpack.c.bf16 %v1376, %v1376
        %v1380 = vunpack.c.l.bf16 %v1379
        %v1381 = vmax.f32 %v1380, 0.0
        %v1382 = vpack.c.bf16 %v1381, %v1381
        %v1384 = vperm.slane %v1290, 0
        %v1390 = vunpack.c.l.b16 %v1286
        %v1391 = vunpack.c.l.b16 %v1287
        %v1392 = vunpack.c.l.b16 %v1288
        %v1393 = vunpack.c.l.b16 %v1289
        %v1394 = vpack.c.b16 %v1391, %v1390
        %v1395 = vpack.c.b16 %v1393, %v1392
        %v1399 = vsel %vm894, %v1382, 0
        %1401 = vmatpush.bf16.msra.mxu0 0
        %1402 = vmatpush.bf16.msra.mxu0 0
        %1403 = vmatpush.bf16.msra.mxu0 0
        %1404 = vmatpush.bf16.msra.mxu0 0
        %1405 = vmatpush.bf16.msra.mxu0 0
        %1406 = vmatpush.bf16.msra.mxu0 0
        %1407 = vmatpush.bf16.msra.mxu0 %v1395
        %1408 = vmatpush.bf16.msra.mxu0 %v1394
        %1409 = vmatmul.bf16.gmra.mxu0 %v1399
        %v1410 = vpop.f32.mrf.mxu0
        %v1411 = vadd.f32 %v1384, %v1410
        %v1412 = vpop.f32.mrf.mxu0
        %1413 = vdwg.mxu0
        %v1414 = vadd.f32 %v1411, %v1272
        %v1415 = vpack.c.bf16 %v1414, %v1414
        %vm1416 = vcmask 257024
        %1417 = vst.msk [vmem:[%s541] sm:$0xf] %vm1416, %v1415
        %s1418 = sand.u32 %s401, 1
        %s1419 = scalar_lea.sflag [#allocation3], %s1418
        %s1420 = sand.u32 %s401, 1
        %s1421 = smul.addr %s1420, 4
        %s1422 = scalar_lea.vmem [#allocation2], %s1421
        // Predicated region
        $region89: #{tpu_custom_call.1} parent=87 // pred_check
          %p1423 = pneg %p411
        $region90: #{tpu_custom_call.1} parent=87 // pred_check_branch
          %1425 = sbr.rel (%p1423) target = $region92
        $region91: #{tpu_custom_call.1} parent=87 // pred_region
          %1427 = vsyncadd %s1419, 0
          %s1428 = smul.addr %s31, 4
          %s1429 = scalar_lea.hbm %s17, %s1428
          %s1431 = sshll.u32 %s1422, 4
          %s1432 = int_to_ptr.vmem [resolvable:$true] %s1431
          %s1433 = sshll.u32 %s1429, 4
          %s1434 = int_to_ptr.hbm [resolvable:$true] %s1433
          %1436 = dma.vmem_to_hbm [thread:$0]  %s1432, 64, %s1434, %s1419
        $region92: #{tpu_custom_call.1} parent=87 // pred_fallthru
          _
      $region88: #{tpu_custom_call.1} parent=5 // pred_fallthru
        _
      %p1437 = scmp.le.s32.totalorder 2, %s26
      // Predicated region
      $region93: #{tpu_custom_call.1} parent=5 // pred_check
        %p1438 = pneg %p1437
      $region94: #{tpu_custom_call.1} parent=5 // pred_check_branch
        %1440 = sbr.rel (%p1438) target = $region96
      $region95: #{tpu_custom_call.1} parent=5 // pred_region
        %s1441 = ssub.s32 %s26, 2
        // Predicated region
        $region97: #{tpu_custom_call.1} parent=95 // pred_check
          %p1442 = pneg %p417
        $region98: #{tpu_custom_call.1} parent=95 // pred_check_branch
          %1444 = sbr.rel (%p1442) target = $region100
        $region99: #{tpu_custom_call.1} parent=95 // pred_region
          %s1445 = sand.u32 %s402, 1
          %s1446 = scalar_lea.sflag [#allocation3], %s1445
          %s1447 = sand.u32 %s402, 1
          %s1448 = smul.addr %s1447, 4
          %s1449 = scalar_lea.vmem [#allocation2], %s1448
          %1451 = dma.done %s1446, 64
        $region100: #{tpu_custom_call.1} parent=95 // pred_fallthru
          _
      $region96: #{tpu_custom_call.1} parent=5 // pred_fallthru
        _
    $region6: #{tpu_custom_call.1} parent=1 // loop_footer
      %s30 = sadd.s32 1, %s26
    $region7: #{tpu_custom_call.1} parent=1 // loop_footer_branch
      %25 = sbr.rel target = $region3
    $region8: #{tpu_custom_call.1} parent=1 // loop_exit
      _
    %1452 = vsyncpa [#allocation3], 1
    %s1453 = scalar_lea.sflag [#allocation3], 1
    %1454 = vsyncpa %s1453, 1

</llo_original>
